<compile_context>
chip_gen: v6e
topology: v6e:2x2x1
jax: 0.10.0
libtpu: 0.0.40
codegen_flags: <defaults>
</compile_context>

<pallas_src>
import functools

import jax
import jax.numpy as jnp
from jax.experimental import pallas as pl
from jax.experimental.pallas import tpu as pltpu

LN_EPS = 1e-5


def _round_up(v, m):
    return (v + m - 1) // m * m


def lynx_kernel(x_ref, gamma_ref, beta_ref, w1_ref, b1_ref,
                wdw_ref, bdw_ref, alpha_ref, w2_ref, b2_ref,
                o_ref, h_ref, *, t_tile, pad, t_true, inner):
    k_taps = wdw_ref.shape[0]
    halo_len = h_ref.shape[0]          # t_tile + 2*pad, rounded up to 8

    t_idx = pl.program_id(1)
    start = pl.multiple_of(t_idx * t_tile, t_tile)   # row offset into padded x

    # ---- load this tile's (tile + halo) window of the pre-padded input ----
    xw = x_ref[0, pl.ds(start, halo_len), :].astype(jnp.float32)  # (halo, dim)

    # ---- LayerNorm over channels (f32) ----
    mean = jnp.mean(xw, axis=-1, keepdims=True)
    var = jnp.mean((xw - mean) ** 2, axis=-1, keepdims=True)
    xn = (xw - mean) * jax.lax.rsqrt(var + LN_EPS)
    xn = xn * gamma_ref[...] + beta_ref[...]

    # ---- fused 1x1 conv (dim -> 2*inner): single bf16 MXU matmul, f32 acc ----
    og = jnp.dot(xn.astype(jnp.bfloat16), w1_ref[...],
                 preferred_element_type=jnp.float32) + b1_ref[...]
    out_h = og[:, :inner]
    gate = og[:, inner:]
    h = out_h * (gate * jax.nn.sigmoid(gate))            # SwiGLU, f32

    # Zero rows outside the true sequence (the conv's zero "same" padding and
    # the T-rounding tail), so the depthwise taps never see pad garbage.
    r = jax.lax.broadcasted_iota(jnp.int32, (halo_len, 1), 0)
    g = start + r - pad                                  # original global row
    h = jnp.where(jnp.logical_and(g >= 0, g < t_true), h, 0.0)

    # Park h in VMEM scratch: tap reads below are plain sublane-offset loads
    # instead of value-level shifted slices / concat relayouts.
    h_ref[...] = h

    # ---- depthwise conv along T ("same" padding, groups == channels) ----
    # y[j] = sum_k h_window[j + k] * w[k] + b   (cross-correlation, as Conv1d)
    acc = h_ref[pl.ds(0, t_tile), :] * wdw_ref[0] + bdw_ref[...]
    for k in range(1, k_taps):                            # static unrolled taps
        acc = acc + h_ref[pl.ds(k, t_tile), :] * wdw_ref[k]

    # ---- PReLU (per-channel alpha) ----
    acc = jnp.where(acc > 0, acc, alpha_ref[...] * acc)

    # ---- 1x1 conv (inner -> dim_padded): bf16 MXU matmul, f32 acc ----
    y = jnp.dot(acc.astype(jnp.bfloat16), w2_ref[...],
                preferred_element_type=jnp.float32) + b2_ref[...]
    o_ref[0] = y.astype(o_ref.dtype)


def lynx_forward(x, params, *, t_tile=None):
    (gamma, beta, w1o, b1o, w1g, b1g, wdw, bdw, alpha, w2, b2) = params
    B, T, dim = x.shape
    inner = w1o.shape[1]
    K = wdw.shape[0]
    pad = K // 2          # K odd (default 31) -> symmetric "same" padding

    # ---- fuse the two 1x1-conv weights into one (dim, 2*inner) RHS (bf16) ----
    w1 = jnp.concatenate([w1o, w1g], axis=1).astype(jnp.bfloat16)
    b1 = jnp.concatenate([b1o, b1g], axis=1)

    # ---- lane-dense output: pad output channels to a multiple of 128 ----
    dim_out = _round_up(dim, 128)
    w2p = jnp.pad(w2, ((0, 0), (0, dim_out - dim))).astype(jnp.bfloat16)
    b2p = jnp.pad(b2, ((0, 0), (0, dim_out - dim)))

    # ---- T tiling: bounds the (tile, inner) temporaries in VMEM ----
    if t_tile is None:
        t_tile = min(_round_up(T, 8), 256)   # 256 keeps temps well under v7x 64MiB
    t_tile = _round_up(t_tile, 8)
    T_pad = _round_up(T, t_tile)
    halo_len = _round_up(t_tile + 2 * pad, 8)

    # Pre-pad the sequence so every (tile + halo) window load is in-bounds.
    # The kernel masks rows outside [0, T) back to zero before the depthwise conv.
    left = pad
    right = (T_pad - T) + (halo_len - t_tile - pad)
    x_p = jnp.pad(x, ((0, 0), (left, right), (0, 0)))
    T_total = T + left + right

    n_t = T_pad // t_tile
    grid = (B, n_t)   # t innermost -> the per-batch x block stays VMEM-resident

    def const_spec(arr):
        nd = arr.ndim
        return pl.BlockSpec(arr.shape, lambda b, t, _nd=nd: (0,) * _nd)

    in_specs = [
        pl.BlockSpec((1, T_total, dim), lambda b, t: (b, 0, 0)),   # x (per batch)
        const_spec(gamma), const_spec(beta),
        const_spec(w1), const_spec(b1),
        const_spec(wdw), const_spec(bdw), const_spec(alpha),
        const_spec(w2p), const_spec(b2p),
    ]
    out_spec = pl.BlockSpec((1, t_tile, dim_out), lambda b, t: (b, t, 0))

    # Rough VMEM budget: double-buffered blocks + scratch + a handful of
    # (halo, 2*inner) f32 temporaries; clamp to [32 MiB, 64 MiB] so the limit is
    # valid on v7x (64 MiB VMEM) while still above the v6e scoped default.
    est = 2 * (T_total * dim + t_tile * dim_out) * 4
    est += 2 * sum(int(a.size) * a.dtype.itemsize
                   for a in (gamma, beta, w1, b1, wdw, bdw, alpha, w2p, b2p))
    est += halo_len * inner * 4
    est += 8 * halo_len * max(2 * inner, dim_out) * 4
    vmem_limit = int(min(max(2 * est, 32 * 1024 * 1024), 64 * 1024 * 1024))

    kernel = functools.partial(lynx_kernel, t_tile=t_tile, pad=pad,
                               t_true=T, inner=inner)

    out = pl.pallas_call(
        kernel,
        out_shape=jax.ShapeDtypeStruct((B, T_pad, dim_out), x.dtype),
        grid_spec=pltpu.PrefetchScalarGridSpec(
            num_scalar_prefetch=0,
            grid=grid,
            in_specs=in_specs,
            out_specs=out_spec,
            scratch_shapes=[pltpu.VMEM((halo_len, inner), jnp.float32)],
        ),
        compiler_params=pltpu.CompilerParams(
            dimension_semantics=("parallel", "parallel"),
            vmem_limit_bytes=vmem_limit,
        ),
    )(x_p, gamma, beta, w1, b1, wdw, bdw, alpha, w2p, b2p)

    return out[:, :T, :dim]


def lynx_reference(x, params):
    """Plain-JAX f32 reference (independent path via lax.conv_general_dilated)."""
    (gamma, beta, w1o, b1o, w1g, b1g, wdw, bdw, alpha, w2, b2) = params
    inner = w1o.shape[1]
    K = wdw.shape[0]
    pad = K // 2

    mean = x.mean(-1, keepdims=True)
    var = ((x - mean) ** 2).mean(-1, keepdims=True)
    xn = (x - mean) / jnp.sqrt(var + LN_EPS) * gamma[0] + beta[0]

    out_h = xn @ w1o + b1o[0]
    gate = xn @ w1g + b1g[0]
    h = out_h * jax.nn.silu(gate)                          # (B, T, inner)

    h_ncw = jnp.transpose(h, (0, 2, 1))                    # (B, inner, T)
    w = jnp.transpose(wdw, (1, 0))[:, None, :]             # (inner, 1, K)
    y = jax.lax.conv_general_dilated(
        h_ncw, w, window_strides=(1,), padding=[(pad, pad)],
        feature_group_count=inner)
    y = y + bdw[0][None, :, None]
    y = jnp.where(y > 0, y, alpha[0][None, :, None] * y)
    y = jnp.transpose(y, (0, 2, 1)) @ w2 + b2[0]
    return y


def make_params(key, dim, expansion_factor, kernel_size):
    inner = dim * expansion_factor
    keys = jax.random.split(key, 10)
    scale = 0.1
    gamma = 1.0 + scale * jax.random.normal(keys[0], (1, dim), jnp.float32)
    beta = scale * jax.random.normal(keys[1], (1, dim), jnp.float32)
    w1o = scale * jax.random.normal(keys[2], (dim, inner), jnp.float32)
    b1o = scale * jax.random.normal(keys[3], (1, inner), jnp.float32)
    w1g = scale * jax.random.normal(keys[4], (dim, inner), jnp.float32)
    b1g = scale * jax.random.normal(keys[5], (1, inner), jnp.float32)
    wdw = scale * jax.random.normal(keys[6], (kernel_size, inner), jnp.float32)
    bdw = scale * jax.random.normal(keys[7], (1, inner), jnp.float32)
    alpha = 0.25 * jnp.ones((1, inner), jnp.float32)       # nn.PReLU default init
    w2 = scale * jax.random.normal(keys[8], (inner, dim), jnp.float32)
    b2 = scale * jax.random.normal(keys[9], (1, dim), jnp.float32)
    return (gamma, beta, w1o, b1o, w1g, b1g, wdw, bdw, alpha, w2, b2)


if __name__ == "__main__":
    B, T, dim = 2, 16, 8
    expansion_factor = 2
    kernel_size = 31            # module default (odd -> symmetric "same" pad)

    key = jax.random.PRNGKey(0)
    kx, kp = jax.random.split(key)
    x = jax.random.normal(kx, (B, T, dim), jnp.float32)
    params = make_params(kp, dim, expansion_factor, kernel_size)

    out = lynx_forward(x, params)
    out = jax.block_until_ready(out)

    ref = jax.block_until_ready(lynx_reference(x, params))
    assert out.shape == (B, T, dim)
    # bf16 MXU matmuls -> slightly relaxed tolerance vs. the f32 reference.
    assert jnp.allclose(out, ref, atol=2e-2, rtol=2e-2), (
        f"max abs diff {jnp.max(jnp.abs(out - ref))}")

    print("KERNEL_OK")
</pallas_src>

<mosaic_0001>
module attributes {stable_mosaic.version = 11 : i64} {
  func.func @lynx_kernel(%arg0: i32, %arg1: i32, %arg2: memref<1x48x8xf32, #tpu.memory_space<vmem>>, %arg3: memref<1x8xf32, #tpu.memory_space<vmem>>, %arg4: memref<1x8xf32, #tpu.memory_space<vmem>>, %arg5: memref<8x32xbf16, #tpu.memory_space<vmem>>, %arg6: memref<1x32xf32, #tpu.memory_space<vmem>>, %arg7: memref<31x16xf32, #tpu.memory_space<vmem>>, %arg8: memref<1x16xf32, #tpu.memory_space<vmem>>, %arg9: memref<1x16xf32, #tpu.memory_space<vmem>>, %arg10: memref<16x128xbf16, #tpu.memory_space<vmem>>, %arg11: memref<1x128xf32, #tpu.memory_space<vmem>>, %arg12: memref<1x16x128xf32, #tpu.memory_space<vmem>>, %arg13: memref<48x16xf32, #tpu.memory_space<vmem>>) attributes {dimension_semantics = [#tpu.dimension_semantics<parallel>, #tpu.dimension_semantics<parallel>], iteration_bounds = array<i64: 2, 1>, scalar_prefetch = 0 : i64, scratch_operands = 1 : i64, tpu.core_type = #tpu.core_type<tc>, window_params = [{transform_indices = @transform_0, window_bounds = array<i64: 1, 48, 8>}, {pipeline_mode = #tpu.pipeline_mode<synchronous>, transform_indices = @transform_1, window_bounds = array<i64: 1, 8>}, {pipeline_mode = #tpu.pipeline_mode<synchronous>, transform_indices = @transform_2, window_bounds = array<i64: 1, 8>}, {pipeline_mode = #tpu.pipeline_mode<synchronous>, transform_indices = @transform_3, window_bounds = array<i64: 8, 32>}, {pipeline_mode = #tpu.pipeline_mode<synchronous>, transform_indices = @transform_4, window_bounds = array<i64: 1, 32>}, {pipeline_mode = #tpu.pipeline_mode<synchronous>, transform_indices = @transform_5, window_bounds = array<i64: 31, 16>}, {pipeline_mode = #tpu.pipeline_mode<synchronous>, transform_indices = @transform_6, window_bounds = array<i64: 1, 16>}, {pipeline_mode = #tpu.pipeline_mode<synchronous>, transform_indices = @transform_7, window_bounds = array<i64: 1, 16>}, {pipeline_mode = #tpu.pipeline_mode<synchronous>, transform_indices = @transform_8, window_bounds = array<i64: 16, 128>}, {pipeline_mode = #tpu.pipeline_mode<synchronous>, transform_indices = @transform_9, window_bounds = array<i64: 1, 128>}, {transform_indices = @transform_10, window_bounds = array<i64: 1, 16, 128>}]} {
    %c16_i32 = arith.constant 16 : i32
    %0 = arith.muli %arg1, %c16_i32 : i32
    %1 = tpu.assume_multiple %0, 16 : i32
    %c0 = arith.constant 0 : index
    %2 = arith.index_cast %1 : i32 to index
    %c0_0 = arith.constant 0 : index
    %3 = vector.load %arg2[%c0, %2, %c0_0] : memref<1x48x8xf32, #tpu.memory_space<vmem>>, vector<1x48x8xf32>
    %4 = vector.shape_cast %3 : vector<1x48x8xf32> to vector<48x8xf32>
    %cst = arith.constant dense<0.000000e+00> : vector<48xf32>
    %5 = vector.multi_reduction <add>, %4, %cst [1] : vector<48x8xf32> to vector<48xf32>
    %6 = vector.shape_cast %5 : vector<48xf32> to vector<48x1xf32>
    %cst_1 = arith.constant 8.000000e+00 : f32
    %7 = vector.broadcast %cst_1 : f32 to vector<48x1xf32>
    %8 = arith.divf %6, %7 : vector<48x1xf32>
    %9 = vector.broadcast %8 : vector<48x1xf32> to vector<48x8xf32>
    %10 = arith.subf %4, %9 : vector<48x8xf32>
    %11 = arith.mulf %10, %10 : vector<48x8xf32>
    %cst_2 = arith.constant dense<0.000000e+00> : vector<48xf32>
    %12 = vector.multi_reduction <add>, %11, %cst_2 [1] : vector<48x8xf32> to vector<48xf32>
    %13 = vector.shape_cast %12 : vector<48xf32> to vector<48x1xf32>
    %cst_3 = arith.constant 8.000000e+00 : f32
    %14 = vector.broadcast %cst_3 : f32 to vector<48x1xf32>
    %15 = arith.divf %13, %14 : vector<48x1xf32>
    %16 = vector.broadcast %8 : vector<48x1xf32> to vector<48x8xf32>
    %17 = arith.subf %4, %16 : vector<48x8xf32>
    %cst_4 = arith.constant 9.99999974E-6 : f32
    %18 = vector.broadcast %cst_4 : f32 to vector<48x1xf32>
    %19 = arith.addf %15, %18 : vector<48x1xf32>
    %20 = math.rsqrt %19 : vector<48x1xf32>
    %21 = vector.broadcast %20 : vector<48x1xf32> to vector<48x8xf32>
    %22 = arith.mulf %17, %21 : vector<48x8xf32>
    %c0_5 = arith.constant 0 : index
    %c0_6 = arith.constant 0 : index
    %23 = vector.load %arg3[%c0_5, %c0_6] : memref<1x8xf32, #tpu.memory_space<vmem>>, vector<1x8xf32>
    %24 = vector.broadcast %23 : vector<1x8xf32> to vector<48x8xf32>
    %25 = arith.mulf %22, %24 : vector<48x8xf32>
    %c0_7 = arith.constant 0 : index
    %c0_8 = arith.constant 0 : index
    %26 = vector.load %arg4[%c0_7, %c0_8] : memref<1x8xf32, #tpu.memory_space<vmem>>, vector<1x8xf32>
    %27 = vector.broadcast %26 : vector<1x8xf32> to vector<48x8xf32>
    %28 = arith.addf %25, %27 : vector<48x8xf32>
    %29 = arith.truncf %28 : vector<48x8xf32> to vector<48x8xbf16>
    %c0_9 = arith.constant 0 : index
    %c0_10 = arith.constant 0 : index
    %30 = vector.load %arg5[%c0_9, %c0_10] : memref<8x32xbf16, #tpu.memory_space<vmem>>, vector<8x32xbf16>
    %cst_11 = arith.constant dense<0.000000e+00> : vector<48x32xf32>
    %31 = tpu.matmul %29, %30, %cst_11 {dimension_numbers = #tpu.dot_dimension_numbers<[1], [0], [0], [1], [0, 0, 1, 1], [], []>} : vector<48x8xbf16>, vector<8x32xbf16>, vector<48x32xf32> -> vector<48x32xf32>
    %c0_12 = arith.constant 0 : index
    %c0_13 = arith.constant 0 : index
    %32 = vector.load %arg6[%c0_12, %c0_13] : memref<1x32xf32, #tpu.memory_space<vmem>>, vector<1x32xf32>
    %33 = vector.broadcast %32 : vector<1x32xf32> to vector<48x32xf32>
    %34 = arith.addf %31, %33 : vector<48x32xf32>
    %35 = vector.extract_strided_slice %34 {offsets = [0, 0], sizes = [48, 16], strides = [1, 1]} : vector<48x32xf32> to vector<48x16xf32>
    %36 = vector.extract_strided_slice %34 {offsets = [0, 16], sizes = [48, 16], strides = [1, 1]} : vector<48x32xf32> to vector<48x16xf32>
    %37 = arith.negf %36 : vector<48x16xf32>
    %38 = math.exp %37 : vector<48x16xf32>
    %cst_14 = arith.constant 1.000000e+00 : f32
    %39 = vector.broadcast %cst_14 : f32 to vector<48x16xf32>
    %40 = arith.addf %39, %38 : vector<48x16xf32>
    %41 = arith.divf %39, %40 : vector<48x16xf32>
    %42 = arith.mulf %36, %41 : vector<48x16xf32>
    %43 = arith.mulf %35, %42 : vector<48x16xf32>
    %44 = tpu.iota {dimensions = array<i32: 0>} : vector<48x1xi32>
    %45 = vector.broadcast %1 : i32 to vector<48x1xi32>
    %46 = arith.addi %45, %44 : vector<48x1xi32>
    %c15_i32 = arith.constant 15 : i32
    %47 = vector.broadcast %c15_i32 : i32 to vector<48x1xi32>
    %48 = arith.subi %46, %47 : vector<48x1xi32>
    %c0_i32 = arith.constant 0 : i32
    %49 = vector.broadcast %c0_i32 : i32 to vector<48x1xi32>
    %50 = arith.cmpi sge, %48, %49 : vector<48x1xi32>
    %c16_i32_15 = arith.constant 16 : i32
    %51 = vector.broadcast %c16_i32_15 : i32 to vector<48x1xi32>
    %52 = arith.cmpi slt, %48, %51 : vector<48x1xi32>
    %53 = arith.andi %50, %52 : vector<48x1xi1>
    %cst_16 = arith.constant 0.000000e+00 : f32
    %54 = vector.shape_cast %53 : vector<48x1xi1> to vector<48x1xi1>
    %55 = vector.broadcast %54 : vector<48x1xi1> to vector<48x16xi1>
    %56 = vector.broadcast %cst_16 : f32 to vector<48x16xf32>
    %57 = arith.select %55, %43, %56 : vector<48x16xi1>, vector<48x16xf32>
    %c0_17 = arith.constant 0 : index
    %c0_18 = arith.constant 0 : index
    %58 = vector.load %arg13[%c0_17, %c0_18] : memref<48x16xf32, #tpu.memory_space<vmem>>, vector<48x16xf32>
    tpu.vector_store %arg13[%c0_17, %c0_18], %57 {strides = array<i32>} : memref<48x16xf32, #tpu.memory_space<vmem>>, vector<48x16xf32>,
    %c0_19 = arith.constant 0 : index
    %c0_20 = arith.constant 0 : index
    %59 = vector.load %arg13[%c0_19, %c0_20] : memref<48x16xf32, #tpu.memory_space<vmem>>, vector<16x16xf32>
    %c0_21 = arith.constant 0 : index
    %c0_22 = arith.constant 0 : index
    %60 = vector.load %arg7[%c0_21, %c0_22] : memref<31x16xf32, #tpu.memory_space<vmem>>, vector<1x16xf32>
    %61 = vector.shape_cast %60 : vector<1x16xf32> to vector<16xf32>
    %62 = vector.shape_cast %61 : vector<16xf32> to vector<1x16xf32>
    %63 = vector.broadcast %62 : vector<1x16xf32> to vector<16x16xf32>
    %64 = arith.mulf %59, %63 : vector<16x16xf32>
    %c0_23 = arith.constant 0 : index
    %c0_24 = arith.constant 0 : index
    %65 = vector.load %arg8[%c0_23, %c0_24] : memref<1x16xf32, #tpu.memory_space<vmem>>, vector<1x16xf32>
    %66 = vector.broadcast %65 : vector<1x16xf32> to vector<16x16xf32>
    %67 = arith.addf %64, %66 : vector<16x16xf32>
    %c1 = arith.constant 1 : index
    %c0_25 = arith.constant 0 : index
    %68 = vector.load %arg13[%c1, %c0_25] : memref<48x16xf32, #tpu.memory_space<vmem>>, vector<16x16xf32>
    %c1_26 = arith.constant 1 : index
    %c0_27 = arith.constant 0 : index
    %69 = vector.load %arg7[%c1_26, %c0_27] : memref<31x16xf32, #tpu.memory_space<vmem>>, vector<1x16xf32>
    %70 = vector.shape_cast %69 : vector<1x16xf32> to vector<16xf32>
    %71 = vector.shape_cast %70 : vector<16xf32> to vector<1x16xf32>
    %72 = vector.broadcast %71 : vector<1x16xf32> to vector<16x16xf32>
    %73 = arith.mulf %68, %72 : vector<16x16xf32>
    %74 = arith.addf %67, %73 : vector<16x16xf32>
    %c2 = arith.constant 2 : index
    %c0_28 = arith.constant 0 : index
    %75 = vector.load %arg13[%c2, %c0_28] : memref<48x16xf32, #tpu.memory_space<vmem>>, vector<16x16xf32>
    %c2_29 = arith.constant 2 : index
    %c0_30 = arith.constant 0 : index
    %76 = vector.load %arg7[%c2_29, %c0_30] : memref<31x16xf32, #tpu.memory_space<vmem>>, vector<1x16xf32>
    %77 = vector.shape_cast %76 : vector<1x16xf32> to vector<16xf32>
    %78 = vector.shape_cast %77 : vector<16xf32> to vector<1x16xf32>
    %79 = vector.broadcast %78 : vector<1x16xf32> to vector<16x16xf32>
    %80 = arith.mulf %75, %79 : vector<16x16xf32>
    %81 = arith.addf %74, %80 : vector<16x16xf32>
    %c3 = arith.constant 3 : index
    %c0_31 = arith.constant 0 : index
    %82 = vector.load %arg13[%c3, %c0_31] : memref<48x16xf32, #tpu.memory_space<vmem>>, vector<16x16xf32>
    %c3_32 = arith.constant 3 : index
    %c0_33 = arith.constant 0 : index
    %83 = vector.load %arg7[%c3_32, %c0_33] : memref<31x16xf32, #tpu.memory_space<vmem>>, vector<1x16xf32>
    %84 = vector.shape_cast %83 : vector<1x16xf32> to vector<16xf32>
    %85 = vector.shape_cast %84 : vector<16xf32> to vector<1x16xf32>
    %86 = vector.broadcast %85 : vector<1x16xf32> to vector<16x16xf32>
    %87 = arith.mulf %82, %86 : vector<16x16xf32>
    %88 = arith.addf %81, %87 : vector<16x16xf32>
    %c4 = arith.constant 4 : index
    %c0_34 = arith.constant 0 : index
    %89 = vector.load %arg13[%c4, %c0_34] : memref<48x16xf32, #tpu.memory_space<vmem>>, vector<16x16xf32>
    %c4_35 = arith.constant 4 : index
    %c0_36 = arith.constant 0 : index
    %90 = vector.load %arg7[%c4_35, %c0_36] : memref<31x16xf32, #tpu.memory_space<vmem>>, vector<1x16xf32>
    %91 = vector.shape_cast %90 : vector<1x16xf32> to vector<16xf32>
    %92 = vector.shape_cast %91 : vector<16xf32> to vector<1x16xf32>
    %93 = vector.broadcast %92 : vector<1x16xf32> to vector<16x16xf32>
    %94 = arith.mulf %89, %93 : vector<16x16xf32>
    %95 = arith.addf %88, %94 : vector<16x16xf32>
    %c5 = arith.constant 5 : index
    %c0_37 = arith.constant 0 : index
    %96 = vector.load %arg13[%c5, %c0_37] : memref<48x16xf32, #tpu.memory_space<vmem>>, vector<16x16xf32>
    %c5_38 = arith.constant 5 : index
    %c0_39 = arith.constant 0 : index
    %97 = vector.load %arg7[%c5_38, %c0_39] : memref<31x16xf32, #tpu.memory_space<vmem>>, vector<1x16xf32>
    %98 = vector.shape_cast %97 : vector<1x16xf32> to vector<16xf32>
    %99 = vector.shape_cast %98 : vector<16xf32> to vector<1x16xf32>
    %100 = vector.broadcast %99 : vector<1x16xf32> to vector<16x16xf32>
    %101 = arith.mulf %96, %100 : vector<16x16xf32>
    %102 = arith.addf %95, %101 : vector<16x16xf32>
    %c6 = arith.constant 6 : index
    %c0_40 = arith.constant 0 : index
    %103 = vector.load %arg13[%c6, %c0_40] : memref<48x16xf32, #tpu.memory_space<vmem>>, vector<16x16xf32>
    %c6_41 = arith.constant 6 : index
    %c0_42 = arith.constant 0 : index
    %104 = vector.load %arg7[%c6_41, %c0_42] : memref<31x16xf32, #tpu.memory_space<vmem>>, vector<1x16xf32>
    %105 = vector.shape_cast %104 : vector<1x16xf32> to vector<16xf32>
    %106 = vector.shape_cast %105 : vector<16xf32> to vector<1x16xf32>
    %107 = vector.broadcast %106 : vector<1x16xf32> to vector<16x16xf32>
    %108 = arith.mulf %103, %107 : vector<16x16xf32>
    %109 = arith.addf %102, %108 : vector<16x16xf32>
    %c7 = arith.constant 7 : index
    %c0_43 = arith.constant 0 : index
    %110 = vector.load %arg13[%c7, %c0_43] : memref<48x16xf32, #tpu.memory_space<vmem>>, vector<16x16xf32>
    %c7_44 = arith.constant 7 : index
    %c0_45 = arith.constant 0 : index
    %111 = vector.load %arg7[%c7_44, %c0_45] : memref<31x16xf32, #tpu.memory_space<vmem>>, vector<1x16xf32>
    %112 = vector.shape_cast %111 : vector<1x16xf32> to vector<16xf32>
    %113 = vector.shape_cast %112 : vector<16xf32> to vector<1x16xf32>
    %114 = vector.broadcast %113 : vector<1x16xf32> to vector<16x16xf32>
    %115 = arith.mulf %110, %114 : vector<16x16xf32>
    %116 = arith.addf %109, %115 : vector<16x16xf32>
    %c8 = arith.constant 8 : index
    %c0_46 = arith.constant 0 : index
    %117 = vector.load %arg13[%c8, %c0_46] : memref<48x16xf32, #tpu.memory_space<vmem>>, vector<16x16xf32>
    %c8_47 = arith.constant 8 : index
    %c0_48 = arith.constant 0 : index
    %118 = vector.load %arg7[%c8_47, %c0_48] : memref<31x16xf32, #tpu.memory_space<vmem>>, vector<1x16xf32>
    %119 = vector.shape_cast %118 : vector<1x16xf32> to vector<16xf32>
    %120 = vector.shape_cast %119 : vector<16xf32> to vector<1x16xf32>
    %121 = vector.broadcast %120 : vector<1x16xf32> to vector<16x16xf32>
    %122 = arith.mulf %117, %121 : vector<16x16xf32>
    %123 = arith.addf %116, %122 : vector<16x16xf32>
    %c9 = arith.constant 9 : index
    %c0_49 = arith.constant 0 : index
    %124 = vector.load %arg13[%c9, %c0_49] : memref<48x16xf32, #tpu.memory_space<vmem>>, vector<16x16xf32>
    %c9_50 = arith.constant 9 : index
    %c0_51 = arith.constant 0 : index
    %125 = vector.load %arg7[%c9_50, %c0_51] : memref<31x16xf32, #tpu.memory_space<vmem>>, vector<1x16xf32>
    %126 = vector.shape_cast %125 : vector<1x16xf32> to vector<16xf32>
    %127 = vector.shape_cast %126 : vector<16xf32> to vector<1x16xf32>
    %128 = vector.broadcast %127 : vector<1x16xf32> to vector<16x16xf32>
    %129 = arith.mulf %124, %128 : vector<16x16xf32>
    %130 = arith.addf %123, %129 : vector<16x16xf32>
    %c10 = arith.constant 10 : index
    %c0_52 = arith.constant 0 : index
    %131 = vector.load %arg13[%c10, %c0_52] : memref<48x16xf32, #tpu.memory_space<vmem>>, vector<16x16xf32>
    %c10_53 = arith.constant 10 : index
    %c0_54 = arith.constant 0 : index
    %132 = vector.load %arg7[%c10_53, %c0_54] : memref<31x16xf32, #tpu.memory_space<vmem>>, vector<1x16xf32>
    %133 = vector.shape_cast %132 : vector<1x16xf32> to vector<16xf32>
    %134 = vector.shape_cast %133 : vector<16xf32> to vector<1x16xf32>
    %135 = vector.broadcast %134 : vector<1x16xf32> to vector<16x16xf32>
    %136 = arith.mulf %131, %135 : vector<16x16xf32>
    %137 = arith.addf %130, %136 : vector<16x16xf32>
    %c11 = arith.constant 11 : index
    %c0_55 = arith.constant 0 : index
    %138 = vector.load %arg13[%c11, %c0_55] : memref<48x16xf32, #tpu.memory_space<vmem>>, vector<16x16xf32>
    %c11_56 = arith.constant 11 : index
    %c0_57 = arith.constant 0 : index
    %139 = vector.load %arg7[%c11_56, %c0_57] : memref<31x16xf32, #tpu.memory_space<vmem>>, vector<1x16xf32>
    %140 = vector.shape_cast %139 : vector<1x16xf32> to vector<16xf32>
    %141 = vector.shape_cast %140 : vector<16xf32> to vector<1x16xf32>
    %142 = vector.broadcast %141 : vector<1x16xf32> to vector<16x16xf32>
    %143 = arith.mulf %138, %142 : vector<16x16xf32>
    %144 = arith.addf %137, %143 : vector<16x16xf32>
    %c12 = arith.constant 12 : index
    %c0_58 = arith.constant 0 : index
    %145 = vector.load %arg13[%c12, %c0_58] : memref<48x16xf32, #tpu.memory_space<vmem>>, vector<16x16xf32>
    %c12_59 = arith.constant 12 : index
    %c0_60 = arith.constant 0 : index
    %146 = vector.load %arg7[%c12_59, %c0_60] : memref<31x16xf32, #tpu.memory_space<vmem>>, vector<1x16xf32>
    %147 = vector.shape_cast %146 : vector<1x16xf32> to vector<16xf32>
    %148 = vector.shape_cast %147 : vector<16xf32> to vector<1x16xf32>
    %149 = vector.broadcast %148 : vector<1x16xf32> to vector<16x16xf32>
    %150 = arith.mulf %145, %149 : vector<16x16xf32>
    %151 = arith.addf %144, %150 : vector<16x16xf32>
    %c13 = arith.constant 13 : index
    %c0_61 = arith.constant 0 : index
    %152 = vector.load %arg13[%c13, %c0_61] : memref<48x16xf32, #tpu.memory_space<vmem>>, vector<16x16xf32>
    %c13_62 = arith.constant 13 : index
    %c0_63 = arith.constant 0 : index
    %153 = vector.load %arg7[%c13_62, %c0_63] : memref<31x16xf32, #tpu.memory_space<vmem>>, vector<1x16xf32>
    %154 = vector.shape_cast %153 : vector<1x16xf32> to vector<16xf32>
    %155 = vector.shape_cast %154 : vector<16xf32> to vector<1x16xf32>
    %156 = vector.broadcast %155 : vector<1x16xf32> to vector<16x16xf32>
    %157 = arith.mulf %152, %156 : vector<16x16xf32>
    %158 = arith.addf %151, %157 : vector<16x16xf32>
    %c14 = arith.constant 14 : index
    %c0_64 = arith.constant 0 : index
    %159 = vector.load %arg13[%c14, %c0_64] : memref<48x16xf32, #tpu.memory_space<vmem>>, vector<16x16xf32>
    %c14_65 = arith.constant 14 : index
    %c0_66 = arith.constant 0 : index
    %160 = vector.load %arg7[%c14_65, %c0_66] : memref<31x16xf32, #tpu.memory_space<vmem>>, vector<1x16xf32>
    %161 = vector.shape_cast %160 : vector<1x16xf32> to vector<16xf32>
    %162 = vector.shape_cast %161 : vector<16xf32> to vector<1x16xf32>
    %163 = vector.broadcast %162 : vector<1x16xf32> to vector<16x16xf32>
    %164 = arith.mulf %159, %163 : vector<16x16xf32>
    %165 = arith.addf %158, %164 : vector<16x16xf32>
    %c15 = arith.constant 15 : index
    %c0_67 = arith.constant 0 : index
    %166 = vector.load %arg13[%c15, %c0_67] : memref<48x16xf32, #tpu.memory_space<vmem>>, vector<16x16xf32>
    %c15_68 = arith.constant 15 : index
    %c0_69 = arith.constant 0 : index
    %167 = vector.load %arg7[%c15_68, %c0_69] : memref<31x16xf32, #tpu.memory_space<vmem>>, vector<1x16xf32>
    %168 = vector.shape_cast %167 : vector<1x16xf32> to vector<16xf32>
    %169 = vector.shape_cast %168 : vector<16xf32> to vector<1x16xf32>
    %170 = vector.broadcast %169 : vector<1x16xf32> to vector<16x16xf32>
    %171 = arith.mulf %166, %170 : vector<16x16xf32>
    %172 = arith.addf %165, %171 : vector<16x16xf32>
    %c16 = arith.constant 16 : index
    %c0_70 = arith.constant 0 : index
    %173 = vector.load %arg13[%c16, %c0_70] : memref<48x16xf32, #tpu.memory_space<vmem>>, vector<16x16xf32>
    %c16_71 = arith.constant 16 : index
    %c0_72 = arith.constant 0 : index
    %174 = vector.load %arg7[%c16_71, %c0_72] : memref<31x16xf32, #tpu.memory_space<vmem>>, vector<1x16xf32>
    %175 = vector.shape_cast %174 : vector<1x16xf32> to vector<16xf32>
    %176 = vector.shape_cast %175 : vector<16xf32> to vector<1x16xf32>
    %177 = vector.broadcast %176 : vector<1x16xf32> to vector<16x16xf32>
    %178 = arith.mulf %173, %177 : vector<16x16xf32>
    %179 = arith.addf %172, %178 : vector<16x16xf32>
    %c17 = arith.constant 17 : index
    %c0_73 = arith.constant 0 : index
    %180 = vector.load %arg13[%c17, %c0_73] : memref<48x16xf32, #tpu.memory_space<vmem>>, vector<16x16xf32>
    %c17_74 = arith.constant 17 : index
    %c0_75 = arith.constant 0 : index
    %181 = vector.load %arg7[%c17_74, %c0_75] : memref<31x16xf32, #tpu.memory_space<vmem>>, vector<1x16xf32>
    %182 = vector.shape_cast %181 : vector<1x16xf32> to vector<16xf32>
    %183 = vector.shape_cast %182 : vector<16xf32> to vector<1x16xf32>
    %184 = vector.broadcast %183 : vector<1x16xf32> to vector<16x16xf32>
    %185 = arith.mulf %180, %184 : vector<16x16xf32>
    %186 = arith.addf %179, %185 : vector<16x16xf32>
    %c18 = arith.constant 18 : index
    %c0_76 = arith.constant 0 : index
    %187 = vector.load %arg13[%c18, %c0_76] : memref<48x16xf32, #tpu.memory_space<vmem>>, vector<16x16xf32>
    %c18_77 = arith.constant 18 : index
    %c0_78 = arith.constant 0 : index
    %188 = vector.load %arg7[%c18_77, %c0_78] : memref<31x16xf32, #tpu.memory_space<vmem>>, vector<1x16xf32>
    %189 = vector.shape_cast %188 : vector<1x16xf32> to vector<16xf32>
    %190 = vector.shape_cast %189 : vector<16xf32> to vector<1x16xf32>
    %191 = vector.broadcast %190 : vector<1x16xf32> to vector<16x16xf32>
    %192 = arith.mulf %187, %191 : vector<16x16xf32>
    %193 = arith.addf %186, %192 : vector<16x16xf32>
    %c19 = arith.constant 19 : index
    %c0_79 = arith.constant 0 : index
    %194 = vector.load %arg13[%c19, %c0_79] : memref<48x16xf32, #tpu.memory_space<vmem>>, vector<16x16xf32>
    %c19_80 = arith.constant 19 : index
    %c0_81 = arith.constant 0 : index
    %195 = vector.load %arg7[%c19_80, %c0_81] : memref<31x16xf32, #tpu.memory_space<vmem>>, vector<1x16xf32>
    %196 = vector.shape_cast %195 : vector<1x16xf32> to vector<16xf32>
    %197 = vector.shape_cast %196 : vector<16xf32> to vector<1x16xf32>
    %198 = vector.broadcast %197 : vector<1x16xf32> to vector<16x16xf32>
    %199 = arith.mulf %194, %198 : vector<16x16xf32>
    %200 = arith.addf %193, %199 : vector<16x16xf32>
    %c20 = arith.constant 20 : index
    %c0_82 = arith.constant 0 : index
    %201 = vector.load %arg13[%c20, %c0_82] : memref<48x16xf32, #tpu.memory_space<vmem>>, vector<16x16xf32>
    %c20_83 = arith.constant 20 : index
    %c0_84 = arith.constant 0 : index
    %202 = vector.load %arg7[%c20_83, %c0_84] : memref<31x16xf32, #tpu.memory_space<vmem>>, vector<1x16xf32>
    %203 = vector.shape_cast %202 : vector<1x16xf32> to vector<16xf32>
    %204 = vector.shape_cast %203 : vector<16xf32> to vector<1x16xf32>
    %205 = vector.broadcast %204 : vector<1x16xf32> to vector<16x16xf32>
    %206 = arith.mulf %201, %205 : vector<16x16xf32>
    %207 = arith.addf %200, %206 : vector<16x16xf32>
    %c21 = arith.constant 21 : index
    %c0_85 = arith.constant 0 : index
    %208 = vector.load %arg13[%c21, %c0_85] : memref<48x16xf32, #tpu.memory_space<vmem>>, vector<16x16xf32>
    %c21_86 = arith.constant 21 : index
    %c0_87 = arith.constant 0 : index
    %209 = vector.load %arg7[%c21_86, %c0_87] : memref<31x16xf32, #tpu.memory_space<vmem>>, vector<1x16xf32>
    %210 = vector.shape_cast %209 : vector<1x16xf32> to vector<16xf32>
    %211 = vector.shape_cast %210 : vector<16xf32> to vector<1x16xf32>
    %212 = vector.broadcast %211 : vector<1x16xf32> to vector<16x16xf32>
    %213 = arith.mulf %208, %212 : vector<16x16xf32>
    %214 = arith.addf %207, %213 : vector<16x16xf32>
    %c22 = arith.constant 22 : index
    %c0_88 = arith.constant 0 : index
    %215 = vector.load %arg13[%c22, %c0_88] : memref<48x16xf32, #tpu.memory_space<vmem>>, vector<16x16xf32>
    %c22_89 = arith.constant 22 : index
    %c0_90 = arith.constant 0 : index
    %216 = vector.load %arg7[%c22_89, %c0_90] : memref<31x16xf32, #tpu.memory_space<vmem>>, vector<1x16xf32>
    %217 = vector.shape_cast %216 : vector<1x16xf32> to vector<16xf32>
    %218 = vector.shape_cast %217 : vector<16xf32> to vector<1x16xf32>
    %219 = vector.broadcast %218 : vector<1x16xf32> to vector<16x16xf32>
    %220 = arith.mulf %215, %219 : vector<16x16xf32>
    %221 = arith.addf %214, %220 : vector<16x16xf32>
    %c23 = arith.constant 23 : index
    %c0_91 = arith.constant 0 : index
    %222 = vector.load %arg13[%c23, %c0_91] : memref<48x16xf32, #tpu.memory_space<vmem>>, vector<16x16xf32>
    %c23_92 = arith.constant 23 : index
    %c0_93 = arith.constant 0 : index
    %223 = vector.load %arg7[%c23_92, %c0_93] : memref<31x16xf32, #tpu.memory_space<vmem>>, vector<1x16xf32>
    %224 = vector.shape_cast %223 : vector<1x16xf32> to vector<16xf32>
    %225 = vector.shape_cast %224 : vector<16xf32> to vector<1x16xf32>
    %226 = vector.broadcast %225 : vector<1x16xf32> to vector<16x16xf32>
    %227 = arith.mulf %222, %226 : vector<16x16xf32>
    %228 = arith.addf %221, %227 : vector<16x16xf32>
    %c24 = arith.constant 24 : index
    %c0_94 = arith.constant 0 : index
    %229 = vector.load %arg13[%c24, %c0_94] : memref<48x16xf32, #tpu.memory_space<vmem>>, vector<16x16xf32>
    %c24_95 = arith.constant 24 : index
    %c0_96 = arith.constant 0 : index
    %230 = vector.load %arg7[%c24_95, %c0_96] : memref<31x16xf32, #tpu.memory_space<vmem>>, vector<1x16xf32>
    %231 = vector.shape_cast %230 : vector<1x16xf32> to vector<16xf32>
    %232 = vector.shape_cast %231 : vector<16xf32> to vector<1x16xf32>
    %233 = vector.broadcast %232 : vector<1x16xf32> to vector<16x16xf32>
    %234 = arith.mulf %229, %233 : vector<16x16xf32>
    %235 = arith.addf %228, %234 : vector<16x16xf32>
    %c25 = arith.constant 25 : index
    %c0_97 = arith.constant 0 : index
    %236 = vector.load %arg13[%c25, %c0_97] : memref<48x16xf32, #tpu.memory_space<vmem>>, vector<16x16xf32>
    %c25_98 = arith.constant 25 : index
    %c0_99 = arith.constant 0 : index
    %237 = vector.load %arg7[%c25_98, %c0_99] : memref<31x16xf32, #tpu.memory_space<vmem>>, vector<1x16xf32>
    %238 = vector.shape_cast %237 : vector<1x16xf32> to vector<16xf32>
    %239 = vector.shape_cast %238 : vector<16xf32> to vector<1x16xf32>
    %240 = vector.broadcast %239 : vector<1x16xf32> to vector<16x16xf32>
    %241 = arith.mulf %236, %240 : vector<16x16xf32>
    %242 = arith.addf %235, %241 : vector<16x16xf32>
    %c26 = arith.constant 26 : index
    %c0_100 = arith.constant 0 : index
    %243 = vector.load %arg13[%c26, %c0_100] : memref<48x16xf32, #tpu.memory_space<vmem>>, vector<16x16xf32>
    %c26_101 = arith.constant 26 : index
    %c0_102 = arith.constant 0 : index
    %244 = vector.load %arg7[%c26_101, %c0_102] : memref<31x16xf32, #tpu.memory_space<vmem>>, vector<1x16xf32>
    %245 = vector.shape_cast %244 : vector<1x16xf32> to vector<16xf32>
    %246 = vector.shape_cast %245 : vector<16xf32> to vector<1x16xf32>
    %247 = vector.broadcast %246 : vector<1x16xf32> to vector<16x16xf32>
    %248 = arith.mulf %243, %247 : vector<16x16xf32>
    %249 = arith.addf %242, %248 : vector<16x16xf32>
    %c27 = arith.constant 27 : index
    %c0_103 = arith.constant 0 : index
    %250 = vector.load %arg13[%c27, %c0_103] : memref<48x16xf32, #tpu.memory_space<vmem>>, vector<16x16xf32>
    %c27_104 = arith.constant 27 : index
    %c0_105 = arith.constant 0 : index
    %251 = vector.load %arg7[%c27_104, %c0_105] : memref<31x16xf32, #tpu.memory_space<vmem>>, vector<1x16xf32>
    %252 = vector.shape_cast %251 : vector<1x16xf32> to vector<16xf32>
    %253 = vector.shape_cast %252 : vector<16xf32> to vector<1x16xf32>
    %254 = vector.broadcast %253 : vector<1x16xf32> to vector<16x16xf32>
    %255 = arith.mulf %250, %254 : vector<16x16xf32>
    %256 = arith.addf %249, %255 : vector<16x16xf32>
    %c28 = arith.constant 28 : index
    %c0_106 = arith.constant 0 : index
    %257 = vector.load %arg13[%c28, %c0_106] : memref<48x16xf32, #tpu.memory_space<vmem>>, vector<16x16xf32>
    %c28_107 = arith.constant 28 : index
    %c0_108 = arith.constant 0 : index
    %258 = vector.load %arg7[%c28_107, %c0_108] : memref<31x16xf32, #tpu.memory_space<vmem>>, vector<1x16xf32>
    %259 = vector.shape_cast %258 : vector<1x16xf32> to vector<16xf32>
    %260 = vector.shape_cast %259 : vector<16xf32> to vector<1x16xf32>
    %261 = vector.broadcast %260 : vector<1x16xf32> to vector<16x16xf32>
    %262 = arith.mulf %257, %261 : vector<16x16xf32>
    %263 = arith.addf %256, %262 : vector<16x16xf32>
    %c29 = arith.constant 29 : index
    %c0_109 = arith.constant 0 : index
    %264 = vector.load %arg13[%c29, %c0_109] : memref<48x16xf32, #tpu.memory_space<vmem>>, vector<16x16xf32>
    %c29_110 = arith.constant 29 : index
    %c0_111 = arith.constant 0 : index
    %265 = vector.load %arg7[%c29_110, %c0_111] : memref<31x16xf32, #tpu.memory_space<vmem>>, vector<1x16xf32>
    %266 = vector.shape_cast %265 : vector<1x16xf32> to vector<16xf32>
    %267 = vector.shape_cast %266 : vector<16xf32> to vector<1x16xf32>
    %268 = vector.broadcast %267 : vector<1x16xf32> to vector<16x16xf32>
    %269 = arith.mulf %264, %268 : vector<16x16xf32>
    %270 = arith.addf %263, %269 : vector<16x16xf32>
    %c30 = arith.constant 30 : index
    %c0_112 = arith.constant 0 : index
    %271 = vector.load %arg13[%c30, %c0_112] : memref<48x16xf32, #tpu.memory_space<vmem>>, vector<16x16xf32>
    %c30_113 = arith.constant 30 : index
    %c0_114 = arith.constant 0 : index
    %272 = vector.load %arg7[%c30_113, %c0_114] : memref<31x16xf32, #tpu.memory_space<vmem>>, vector<1x16xf32>
    %273 = vector.shape_cast %272 : vector<1x16xf32> to vector<16xf32>
    %274 = vector.shape_cast %273 : vector<16xf32> to vector<1x16xf32>
    %275 = vector.broadcast %274 : vector<1x16xf32> to vector<16x16xf32>
    %276 = arith.mulf %271, %275 : vector<16x16xf32>
    %277 = arith.addf %270, %276 : vector<16x16xf32>
    %cst_115 = arith.constant 0.000000e+00 : f32
    %278 = vector.broadcast %cst_115 : f32 to vector<16x16xf32>
    %279 = arith.cmpf ogt, %277, %278 : vector<16x16xf32>
    %c0_116 = arith.constant 0 : index
    %c0_117 = arith.constant 0 : index
    %280 = vector.load %arg9[%c0_116, %c0_117] : memref<1x16xf32, #tpu.memory_space<vmem>>, vector<1x16xf32>
    %281 = vector.broadcast %280 : vector<1x16xf32> to vector<16x16xf32>
    %282 = arith.mulf %281, %277 : vector<16x16xf32>
    %283 = arith.select %279, %277, %282 : vector<16x16xi1>, vector<16x16xf32>
    %284 = arith.truncf %283 : vector<16x16xf32> to vector<16x16xbf16>
    %c0_118 = arith.constant 0 : index
    %c0_119 = arith.constant 0 : index
    %285 = vector.load %arg10[%c0_118, %c0_119] : memref<16x128xbf16, #tpu.memory_space<vmem>>, vector<16x128xbf16>
    %cst_120 = arith.constant dense<0.000000e+00> : vector<16x128xf32>
    %286 = tpu.matmul %284, %285, %cst_120 {dimension_numbers = #tpu.dot_dimension_numbers<[1], [0], [0], [1], [0, 0, 1, 1], [], []>} : vector<16x16xbf16>, vector<16x128xbf16>, vector<16x128xf32> -> vector<16x128xf32>
    %c0_121 = arith.constant 0 : index
    %c0_122 = arith.constant 0 : index
    %287 = vector.load %arg11[%c0_121, %c0_122] : memref<1x128xf32, #tpu.memory_space<vmem>>, vector<1x128xf32>
    %288 = vector.broadcast %287 : vector<1x128xf32> to vector<16x128xf32>
    %289 = arith.addf %286, %288 : vector<16x128xf32>
    %c0_123 = arith.constant 0 : index
    %c0_124 = arith.constant 0 : index
    %c0_125 = arith.constant 0 : index
    %290 = vector.load %arg12[%c0_123, %c0_124, %c0_125] : memref<1x16x128xf32, #tpu.memory_space<vmem>>, vector<1x16x128xf32>
    %291 = vector.shape_cast %290 : vector<1x16x128xf32> to vector<16x128xf32>
    %292 = vector.shape_cast %289 : vector<16x128xf32> to vector<1x16x128xf32>
    tpu.vector_store %arg12[%c0_123, %c0_124, %c0_125], %292 {strides = array<i32>} : memref<1x16x128xf32, #tpu.memory_space<vmem>>, vector<1x16x128xf32>,
    return
  }
  func.func @transform_0(%arg0: i32, %arg1: i32) -> (i32, i32, i32) {
    %c0_i32 = arith.constant 0 : i32
    %c0_i32_0 = arith.constant 0 : i32
    %c0_i32_1 = arith.constant 0 : i32
    return %arg0, %c0_i32, %c0_i32_0 : i32, i32, i32
  }
  func.func @transform_1(%arg0: i32, %arg1: i32) -> (i32, i32) {
    %c0_i32 = arith.constant 0 : i32
    %c0_i32_0 = arith.constant 0 : i32
    %c0_i32_1 = arith.constant 0 : i32
    return %c0_i32, %c0_i32_0 : i32, i32
  }
  func.func @transform_2(%arg0: i32, %arg1: i32) -> (i32, i32) {
    %c0_i32 = arith.constant 0 : i32
    %c0_i32_0 = arith.constant 0 : i32
    %c0_i32_1 = arith.constant 0 : i32
    return %c0_i32, %c0_i32_0 : i32, i32
  }
  func.func @transform_3(%arg0: i32, %arg1: i32) -> (i32, i32) {
    %c0_i32 = arith.constant 0 : i32
    %c0_i32_0 = arith.constant 0 : i32
    %c0_i32_1 = arith.constant 0 : i32
    return %c0_i32, %c0_i32_0 : i32, i32
  }
  func.func @transform_4(%arg0: i32, %arg1: i32) -> (i32, i32) {
    %c0_i32 = arith.constant 0 : i32
    %c0_i32_0 = arith.constant 0 : i32
    %c0_i32_1 = arith.constant 0 : i32
    return %c0_i32, %c0_i32_0 : i32, i32
  }
  func.func @transform_5(%arg0: i32, %arg1: i32) -> (i32, i32) {
    %c0_i32 = arith.constant 0 : i32
    %c0_i32_0 = arith.constant 0 : i32
    %c0_i32_1 = arith.constant 0 : i32
    return %c0_i32, %c0_i32_0 : i32, i32
  }
  func.func @transform_6(%arg0: i32, %arg1: i32) -> (i32, i32) {
    %c0_i32 = arith.constant 0 : i32
    %c0_i32_0 = arith.constant 0 : i32
    %c0_i32_1 = arith.constant 0 : i32
    return %c0_i32, %c0_i32_0 : i32, i32
  }
  func.func @transform_7(%arg0: i32, %arg1: i32) -> (i32, i32) {
    %c0_i32 = arith.constant 0 : i32
    %c0_i32_0 = arith.constant 0 : i32
    %c0_i32_1 = arith.constant 0 : i32
    return %c0_i32, %c0_i32_0 : i32, i32
  }
  func.func @transform_8(%arg0: i32, %arg1: i32) -> (i32, i32) {
    %c0_i32 = arith.constant 0 : i32
    %c0_i32_0 = arith.constant 0 : i32
    %c0_i32_1 = arith.constant 0 : i32
    return %c0_i32, %c0_i32_0 : i32, i32
  }
  func.func @transform_9(%arg0: i32, %arg1: i32) -> (i32, i32) {
    %c0_i32 = arith.constant 0 : i32
    %c0_i32_0 = arith.constant 0 : i32
    %c0_i32_1 = arith.constant 0 : i32
    return %c0_i32, %c0_i32_0 : i32, i32
  }
  func.func @transform_10(%arg0: i32, %arg1: i32) -> (i32, i32, i32) {
    %c0_i32 = arith.constant 0 : i32
    %c0_i32_0 = arith.constant 0 : i32
    return %arg0, %arg1, %c0_i32 : i32, i32, i32
  }
}

</mosaic_0001>

<llo_original>
// kernel: tpu_custom_call.1
$region0: #{tpu_custom_call.1}
  #allocation0 [shape = 'u32[]', space=smem, size = 0x4, offset = 0x4, fixed_abs, tag = 'smem constant byte address 0x4 - core index']
  #allocation1 [shape = 'u32[144,128]{1,0:T(1,128)}', space=vmem, size = 0x12000, scoped, tag = 'internal scratch']
  #allocation2 [shape = 'f32[48,16]{1,0:T(8,128)}', space=vmem, size = 0x6000, scoped, tag = 'scratch operand']
  %s0 = inlined_call_operand.vmem [shape: f32[2,48,8], index: 0, kind: input, shape index: {}]
  %s1 = inlined_call_operand.vmem [shape: f32[1,8], index: 1, kind: input, shape index: {}]
  %s2 = inlined_call_operand.vmem [shape: f32[1,8], index: 2, kind: input, shape index: {}]
  %s3 = inlined_call_operand.vmem [shape: bf16[8,32], index: 3, kind: input, shape index: {}]
  %s4 = inlined_call_operand.vmem [shape: f32[1,32], index: 4, kind: input, shape index: {}]
  %s5 = inlined_call_operand.vmem [shape: f32[31,16], index: 5, kind: input, shape index: {}]
  %s6 = inlined_call_operand.vmem [shape: f32[1,16], index: 6, kind: input, shape index: {}]
  %s7 = inlined_call_operand.vmem [shape: f32[1,16], index: 7, kind: input, shape index: {}]
  %s8 = inlined_call_operand.vmem [shape: bf16[16,128], index: 8, kind: input, shape index: {}]
  %s9 = inlined_call_operand.vmem [shape: f32[1,128], index: 9, kind: input, shape index: {}]
  %s10 = inlined_call_operand.hbm [shape: f32[2,16,128], index: 10, kind: output, shape index: {}]
  %s11 = sld [smem:[#allocation0]]
  $region73: #{tpu_custom_call.1} parent=0
    _
  %s13 = ssub.s32 1, %s11
  %s14 = scalar_select 0, %s13, %s11
  $region1: #{tpu_custom_call.1} parent=0
    #allocation3 [shape = 'u8[16384]{0}', space=vmem, size = 0x4000, scoped, tag = 'output window, operand 0']
    #allocation4 [shape = 's32[2]{0}', space=sflag, size = 0x8, scoped, tag = 'scoped memory for tpu_custom_call.1']
    %15 = vsyncpa [#allocation4], 0
    %s16 = scalar_lea.sflag [#allocation4], 1
    %17 = vsyncpa %s16, 0
    loop: start=0, step=1, limit=4
    $region2: #{tpu_custom_call.1} parent=1 // loop_pre_header
      _
    $region3: #{tpu_custom_call.1} parent=1 // loop_header
      %s19 = sphi 0, %s23
      %p20 = scmp.ge.s32.totalorder %s19, 4
      %s26 = sphi 0, %s38
      %s27 = sphi 0, %s34
      %s28 = sphi 0, %s26
      %s29 = sphi 0, %s27
      %s30 = sphi 0, %s28
      %s31 = sphi 0, %s29
      %s41 = sphi 0, %s43
      %s44 = sphi 0, %s41
      %s45 = sphi 0, %s44
      %s61 = sphi 0, %s45
      %s65 = sphi 0, %s65
      %s67 = sphi 0, %s65
      %s68 = sphi 0, %s67
      %s82 = sphi 0, %s68
      %s86 = sphi 0, %s86
      %s88 = sphi 0, %s86
      %s89 = sphi 0, %s88
      %s103 = sphi 0, %s89
      %s107 = sphi 0, %s107
      %s109 = sphi 0, %s107
      %s110 = sphi 0, %s109
      %s124 = sphi 0, %s110
      %s128 = sphi 0, %s128
      %s130 = sphi 0, %s128
      %s131 = sphi 0, %s130
      %s145 = sphi 0, %s131
      %s149 = sphi 0, %s149
      %s151 = sphi 0, %s149
      %s152 = sphi 0, %s151
      %s166 = sphi 0, %s152
      %s170 = sphi 0, %s170
      %s172 = sphi 0, %s170
      %s173 = sphi 0, %s172
      %s187 = sphi 0, %s173
      %s191 = sphi 0, %s191
      %s193 = sphi 0, %s191
      %s194 = sphi 0, %s193
      %s208 = sphi 0, %s194
      %s212 = sphi 0, %s212
      %s214 = sphi 0, %s212
      %s215 = sphi 0, %s214
      %s229 = sphi 0, %s215
      %s233 = sphi 0, %s233
      %s235 = sphi 0, %s233
      %s236 = sphi 0, %s235
      %s250 = sphi 0, %s236
      %s258 = sphi 0, %s260
      %s261 = sphi 0, %s258
      %s262 = sphi 0, %s261
      %s278 = sphi 0, %s262
    $region4: #{tpu_custom_call.1} parent=1 // loop_header_branch
      %22 = sbr.rel (%p20) target = $region8
    $region5: #{tpu_custom_call.1} parent=1 // loop_body
      %s24 = ssub.s32 %s19, 1
      %s25 = ssub.s32 %s19, 2
      %s32 = sadd.s32 1, %s27
      %p33 = scmp.ge.s32.totalorder %s32, 1
      %s34 = scalar_select %p33, 0, %s32
      %s35 = sadd.s32 1, %s26
      %s36 = scalar_select %p33, %s35, %s26
      %p37 = scmp.ge.s32.totalorder %s36, 2
      %s38 = scalar_select %p37, 0, %s36
      %s39 = ssub.s32 %s26, %s38
      %p40 = scmp.eq.s32.totalorder %s39, 0
      %s42 = sadd.s32 %s41, 1
      %s43 = scalar_select %p40, %s41, %s42
      %p46 = pneg %p40
      %p47 = scmp.eq.s32.totalorder %s19, 1
      %p48 = por %p46, %p47
      %p49 = scmp.ne.s32.totalorder %s41, %s44
      %p50 = scmp.eq.s32.totalorder %s19, 0
      %p51 = por %p49, %p50
      %p52 = scmp.ne.s32.totalorder %s41, %s44
      %p53 = scmp.eq.s32.totalorder %s24, 1
      %p54 = por %p52, %p53
      %p55 = scmp.ne.s32.totalorder %s44, %s45
      %p56 = scmp.eq.s32.totalorder %s24, 0
      %p57 = por %p55, %p56
      %p58 = scmp.ne.s32.totalorder %s44, %s45
      %p59 = scmp.eq.s32.totalorder %s25, 1
      %p60 = por %p58, %p59
      %p62 = scmp.ne.s32.totalorder %s45, %s61
      %p63 = scmp.eq.s32.totalorder %s25, 0
      %p64 = por %p62, %p63
      %s66 = sadd.s32 %s65, 1
      %p69 = scmp.eq.s32.totalorder %s19, 1
      %p70 = scmp.ne.s32.totalorder %s65, %s67
      %p71 = scmp.eq.s32.totalorder %s19, 0
      %p72 = por %p70, %p71
      %p73 = scmp.ne.s32.totalorder %s65, %s67
      %p74 = scmp.eq.s32.totalorder %s24, 1
      %p75 = por %p73, %p74
      %p76 = scmp.ne.s32.totalorder %s67, %s68
      %p77 = scmp.eq.s32.totalorder %s24, 0
      %p78 = por %p76, %p77
      %p79 = scmp.ne.s32.totalorder %s67, %s68
      %p80 = scmp.eq.s32.totalorder %s25, 1
      %p81 = por %p79, %p80
      %p83 = scmp.ne.s32.totalorder %s68, %s82
      %p84 = scmp.eq.s32.totalorder %s25, 0
      %p85 = por %p83, %p84
      %s87 = sadd.s32 %s86, 1
      %p90 = scmp.eq.s32.totalorder %s19, 1
      %p91 = scmp.ne.s32.totalorder %s86, %s88
      %p92 = scmp.eq.s32.totalorder %s19, 0
      %p93 = por %p91, %p92
      %p94 = scmp.ne.s32.totalorder %s86, %s88
      %p95 = scmp.eq.s32.totalorder %s24, 1
      %p96 = por %p94, %p95
      %p97 = scmp.ne.s32.totalorder %s88, %s89
      %p98 = scmp.eq.s32.totalorder %s24, 0
      %p99 = por %p97, %p98
      %p100 = scmp.ne.s32.totalorder %s88, %s89
      %p101 = scmp.eq.s32.totalorder %s25, 1
      %p102 = por %p100, %p101
      %p104 = scmp.ne.s32.totalorder %s89, %s103
      %p105 = scmp.eq.s32.totalorder %s25, 0
      %p106 = por %p104, %p105
      %s108 = sadd.s32 %s107, 1
      %p111 = scmp.eq.s32.totalorder %s19, 1
      %p112 = scmp.ne.s32.totalorder %s107, %s109
      %p113 = scmp.eq.s32.totalorder %s19, 0
      %p114 = por %p112, %p113
      %p115 = scmp.ne.s32.totalorder %s107, %s109
      %p116 = scmp.eq.s32.totalorder %s24, 1
      %p117 = por %p115, %p116
      %p118 = scmp.ne.s32.totalorder %s109, %s110
      %p119 = scmp.eq.s32.totalorder %s24, 0
      %p120 = por %p118, %p119
      %p121 = scmp.ne.s32.totalorder %s109, %s110
      %p122 = scmp.eq.s32.totalorder %s25, 1
      %p123 = por %p121, %p122
      %p125 = scmp.ne.s32.totalorder %s110, %s124
      %p126 = scmp.eq.s32.totalorder %s25, 0
      %p127 = por %p125, %p126
      %s129 = sadd.s32 %s128, 1
      %p132 = scmp.eq.s32.totalorder %s19, 1
      %p133 = scmp.ne.s32.totalorder %s128, %s130
      %p134 = scmp.eq.s32.totalorder %s19, 0
      %p135 = por %p133, %p134
      %p136 = scmp.ne.s32.totalorder %s128, %s130
      %p137 = scmp.eq.s32.totalorder %s24, 1
      %p138 = por %p136, %p137
      %p139 = scmp.ne.s32.totalorder %s130, %s131
      %p140 = scmp.eq.s32.totalorder %s24, 0
      %p141 = por %p139, %p140
      %p142 = scmp.ne.s32.totalorder %s130, %s131
      %p143 = scmp.eq.s32.totalorder %s25, 1
      %p144 = por %p142, %p143
      %p146 = scmp.ne.s32.totalorder %s131, %s145
      %p147 = scmp.eq.s32.totalorder %s25, 0
      %p148 = por %p146, %p147
      %s150 = sadd.s32 %s149, 1
      %p153 = scmp.eq.s32.totalorder %s19, 1
      %p154 = scmp.ne.s32.totalorder %s149, %s151
      %p155 = scmp.eq.s32.totalorder %s19, 0
      %p156 = por %p154, %p155
      %p157 = scmp.ne.s32.totalorder %s149, %s151
      %p158 = scmp.eq.s32.totalorder %s24, 1
      %p159 = por %p157, %p158
      %p160 = scmp.ne.s32.totalorder %s151, %s152
      %p161 = scmp.eq.s32.totalorder %s24, 0
      %p162 = por %p160, %p161
      %p163 = scmp.ne.s32.totalorder %s151, %s152
      %p164 = scmp.eq.s32.totalorder %s25, 1
      %p165 = por %p163, %p164
      %p167 = scmp.ne.s32.totalorder %s152, %s166
      %p168 = scmp.eq.s32.totalorder %s25, 0
      %p169 = por %p167, %p168
      %s171 = sadd.s32 %s170, 1
      %p174 = scmp.eq.s32.totalorder %s19, 1
      %p175 = scmp.ne.s32.totalorder %s170, %s172
      %p176 = scmp.eq.s32.totalorder %s19, 0
      %p177 = por %p175, %p176
      %p178 = scmp.ne.s32.totalorder %s170, %s172
      %p179 = scmp.eq.s32.totalorder %s24, 1
      %p180 = por %p178, %p179
      %p181 = scmp.ne.s32.totalorder %s172, %s173
      %p182 = scmp.eq.s32.totalorder %s24, 0
      %p183 = por %p181, %p182
      %p184 = scmp.ne.s32.totalorder %s172, %s173
      %p185 = scmp.eq.s32.totalorder %s25, 1
      %p186 = por %p184, %p185
      %p188 = scmp.ne.s32.totalorder %s173, %s187
      %p189 = scmp.eq.s32.totalorder %s25, 0
      %p190 = por %p188, %p189
      %s192 = sadd.s32 %s191, 1
      %p195 = scmp.eq.s32.totalorder %s19, 1
      %p196 = scmp.ne.s32.totalorder %s191, %s193
      %p197 = scmp.eq.s32.totalorder %s19, 0
      %p198 = por %p196, %p197
      %p199 = scmp.ne.s32.totalorder %s191, %s193
      %p200 = scmp.eq.s32.totalorder %s24, 1
      %p201 = por %p199, %p200
      %p202 = scmp.ne.s32.totalorder %s193, %s194
      %p203 = scmp.eq.s32.totalorder %s24, 0
      %p204 = por %p202, %p203
      %p205 = scmp.ne.s32.totalorder %s193, %s194
      %p206 = scmp.eq.s32.totalorder %s25, 1
      %p207 = por %p205, %p206
      %p209 = scmp.ne.s32.totalorder %s194, %s208
      %p210 = scmp.eq.s32.totalorder %s25, 0
      %p211 = por %p209, %p210
      %s213 = sadd.s32 %s212, 1
      %p216 = scmp.eq.s32.totalorder %s19, 1
      %p217 = scmp.ne.s32.totalorder %s212, %s214
      %p218 = scmp.eq.s32.totalorder %s19, 0
      %p219 = por %p217, %p218
      %p220 = scmp.ne.s32.totalorder %s212, %s214
      %p221 = scmp.eq.s32.totalorder %s24, 1
      %p222 = por %p220, %p221
      %p223 = scmp.ne.s32.totalorder %s214, %s215
      %p224 = scmp.eq.s32.totalorder %s24, 0
      %p225 = por %p223, %p224
      %p226 = scmp.ne.s32.totalorder %s214, %s215
      %p227 = scmp.eq.s32.totalorder %s25, 1
      %p228 = por %p226, %p227
      %p230 = scmp.ne.s32.totalorder %s215, %s229
      %p231 = scmp.eq.s32.totalorder %s25, 0
      %p232 = por %p230, %p231
      %s234 = sadd.s32 %s233, 1
      %p237 = scmp.eq.s32.totalorder %s19, 1
      %p238 = scmp.ne.s32.totalorder %s233, %s235
      %p239 = scmp.eq.s32.totalorder %s19, 0
      %p240 = por %p238, %p239
      %p241 = scmp.ne.s32.totalorder %s233, %s235
      %p242 = scmp.eq.s32.totalorder %s24, 1
      %p243 = por %p241, %p242
      %p244 = scmp.ne.s32.totalorder %s235, %s236
      %p245 = scmp.eq.s32.totalorder %s24, 0
      %p246 = por %p244, %p245
      %p247 = scmp.ne.s32.totalorder %s235, %s236
      %p248 = scmp.eq.s32.totalorder %s25, 1
      %p249 = por %p247, %p248
      %p251 = scmp.ne.s32.totalorder %s236, %s250
      %p252 = scmp.eq.s32.totalorder %s25, 0
      %p253 = por %p251, %p252
      %s254 = ssub.s32 %s26, %s38
      %s255 = ssub.s32 %s27, %s34
      %s256 = sor.u32 %s254, %s255
      %p257 = scmp.eq.s32.totalorder %s256, 0
      %s259 = sadd.s32 %s258, 1
      %s260 = scalar_select %p257, %s258, %s259
      %p263 = pneg %p257
      %p264 = scmp.eq.s32.totalorder %s19, 1
      %p265 = por %p263, %p264
      %p266 = scmp.ne.s32.totalorder %s258, %s261
      %p267 = scmp.eq.s32.totalorder %s19, 0
      %p268 = por %p266, %p267
      %p269 = scmp.ne.s32.totalorder %s258, %s261
      %p270 = scmp.eq.s32.totalorder %s24, 1
      %p271 = por %p269, %p270
      %p272 = scmp.ne.s32.totalorder %s261, %s262
      %p273 = scmp.eq.s32.totalorder %s24, 0
      %p274 = por %p272, %p273
      %p275 = scmp.ne.s32.totalorder %s261, %s262
      %p276 = scmp.eq.s32.totalorder %s25, 1
      %p277 = por %p275, %p276
      %p279 = scmp.ne.s32.totalorder %s262, %s278
      %p280 = scmp.eq.s32.totalorder %s25, 0
      %p281 = por %p279, %p280
      %p282 = scmp.le.s32.totalorder 1, %s19
      %p283 = scmp.lt.s32.totalorder %s19, 3
      %p284 = pnand %p282, %p283
      %p285 = pneg %p284
      // Predicated region
      $region9: #{tpu_custom_call.1} parent=5 // pred_check
        _
      $region10: #{tpu_custom_call.1} parent=5 // pred_check_branch
        %287 = sbr.rel (%p284) target = $region12
      $region11: #{tpu_custom_call.1} parent=5 // pred_region
        %s288 = ssub.s32 %s19, 1
        // Predicated region
        $region13: #{tpu_custom_call.1} parent=11 // pred_check
          %p289 = pneg %p78
        $region14: #{tpu_custom_call.1} parent=11 // pred_check_branch
          %291 = sbr.rel (%p289) target = $region16
        $region15: #{tpu_custom_call.1} parent=11 // pred_region
          _
        $region16: #{tpu_custom_call.1} parent=11 // pred_fallthru
          _
        // Predicated region
        $region17: #{tpu_custom_call.1} parent=11 // pred_check
          %p292 = pneg %p99
        $region18: #{tpu_custom_call.1} parent=11 // pred_check_branch
          %294 = sbr.rel (%p292) target = $region20
        $region19: #{tpu_custom_call.1} parent=11 // pred_region
          _
        $region20: #{tpu_custom_call.1} parent=11 // pred_fallthru
          _
        // Predicated region
        $region21: #{tpu_custom_call.1} parent=11 // pred_check
          %p295 = pneg %p120
        $region22: #{tpu_custom_call.1} parent=11 // pred_check_branch
          %297 = sbr.rel (%p295) target = $region24
        $region23: #{tpu_custom_call.1} parent=11 // pred_region
          _
        $region24: #{tpu_custom_call.1} parent=11 // pred_fallthru
          _
        // Predicated region
        $region25: #{tpu_custom_call.1} parent=11 // pred_check
          %p298 = pneg %p141
        $region26: #{tpu_custom_call.1} parent=11 // pred_check_branch
          %300 = sbr.rel (%p298) target = $region28
        $region27: #{tpu_custom_call.1} parent=11 // pred_region
          _
        $region28: #{tpu_custom_call.1} parent=11 // pred_fallthru
          _
        // Predicated region
        $region29: #{tpu_custom_call.1} parent=11 // pred_check
          %p301 = pneg %p162
        $region30: #{tpu_custom_call.1} parent=11 // pred_check_branch
          %303 = sbr.rel (%p301) target = $region32
        $region31: #{tpu_custom_call.1} parent=11 // pred_region
          _
        $region32: #{tpu_custom_call.1} parent=11 // pred_fallthru
          _
        // Predicated region
        $region33: #{tpu_custom_call.1} parent=11 // pred_check
          %p304 = pneg %p183
        $region34: #{tpu_custom_call.1} parent=11 // pred_check_branch
          %306 = sbr.rel (%p304) target = $region36
        $region35: #{tpu_custom_call.1} parent=11 // pred_region
          _
        $region36: #{tpu_custom_call.1} parent=11 // pred_fallthru
          _
        // Predicated region
        $region37: #{tpu_custom_call.1} parent=11 // pred_check
          %p307 = pneg %p204
        $region38: #{tpu_custom_call.1} parent=11 // pred_check_branch
          %309 = sbr.rel (%p307) target = $region40
        $region39: #{tpu_custom_call.1} parent=11 // pred_region
          _
        $region40: #{tpu_custom_call.1} parent=11 // pred_fallthru
          _
        // Predicated region
        $region41: #{tpu_custom_call.1} parent=11 // pred_check
          %p310 = pneg %p225
        $region42: #{tpu_custom_call.1} parent=11 // pred_check_branch
          %312 = sbr.rel (%p310) target = $region44
        $region43: #{tpu_custom_call.1} parent=11 // pred_region
          _
        $region44: #{tpu_custom_call.1} parent=11 // pred_fallthru
          _
        // Predicated region
        $region45: #{tpu_custom_call.1} parent=11 // pred_check
          %p313 = pneg %p246
        $region46: #{tpu_custom_call.1} parent=11 // pred_check_branch
          %315 = sbr.rel (%p313) target = $region48
        $region47: #{tpu_custom_call.1} parent=11 // pred_region
          _
        $region48: #{tpu_custom_call.1} parent=11 // pred_fallthru
          _
      $region12: #{tpu_custom_call.1} parent=5 // pred_fallthru
        _
      %p316 = scmp.lt.s32.totalorder %s19, 2
      // Predicated region
      $region49: #{tpu_custom_call.1} parent=5 // pred_check
        %p317 = pneg %p316
      $region50: #{tpu_custom_call.1} parent=5 // pred_check_branch
        %319 = sbr.rel (%p317) target = $region52
      $region51: #{tpu_custom_call.1} parent=5 // pred_region
        // Predicated region
        $region53: #{tpu_custom_call.1} parent=51 // pred_check
          %p320 = pneg %p51
        $region54: #{tpu_custom_call.1} parent=51 // pred_check_branch
          %322 = sbr.rel (%p320) target = $region56
        $region55: #{tpu_custom_call.1} parent=51 // pred_region
          %p323 = scmp.lt.s32.totalorder %s26, 1
          %s324 = scalar_select %p323, %s26, 1
          %s325 = smul.addr %s324, 6
          %s326 = smul.addr %s325, 8
          %s327 = scalar_lea.vmem %s0, %s326
        $region56: #{tpu_custom_call.1} parent=51 // pred_fallthru
          _
      $region52: #{tpu_custom_call.1} parent=5 // pred_fallthru
        _
      %p328 = scmp.le.s32.totalorder 1, %s19
      %p329 = scmp.lt.s32.totalorder %s19, 3
      %p330 = pnand %p328, %p329
      %p331 = pneg %p330
      // Predicated region
      $region57: #{tpu_custom_call.1} parent=5 // pred_check
        _
      $region58: #{tpu_custom_call.1} parent=5 // pred_check_branch
        %333 = sbr.rel (%p330) target = $region60
      $region59: #{tpu_custom_call.1} parent=5 // pred_region
        %s334 = ssub.s32 %s19, 1
        %p335 = scmp.lt.s32.totalorder %s28, 1
        %s336 = scalar_select %p335, %s28, 1
        %s337 = smul.addr %s336, 6
        %s338 = smul.addr %s337, 8
        %s339 = scalar_lea.vmem %s0, %s338
        %p340 = pneg %p57
        %p341 = pneg %p54
        %p342 = pneg %p78
        %p343 = pneg %p75
        %p344 = pneg %p99
        %p345 = pneg %p96
        %p346 = pneg %p120
        %p347 = pneg %p117
        %p348 = pneg %p141
        %p349 = pneg %p138
        %p350 = pneg %p162
        %p351 = pneg %p159
        %p352 = pneg %p183
        %p353 = pneg %p180
        %p354 = pneg %p204
        %p355 = pneg %p201
        %p356 = pneg %p225
        %p357 = pneg %p222
        %p358 = pneg %p246
        %p359 = pneg %p243
        %p360 = pneg %p274
        %p361 = pneg %p271
        %s362 = sand.u32 %s261, 1
        %s363 = scalar_lea.sflag [#allocation4], %s362
        %s364 = sand.u32 %s261, 1
        %s365 = smul.addr %s364, 16
        %s366 = scalar_lea.vmem [#allocation3], %s365
        %p367 = scmp.lt.s32.totalorder %s28, 1
        %s368 = scalar_select %p367, %s28, 1
        %s369 = smul.addr %s368, 6
        %s370 = smul.addr %s369, 8
        %s371 = scalar_lea.vmem %s0, %s370
        %s372 = smul.u32 2, %s29
        %s374 = smul.u32 %s29, 16
        %s375 = scalar_lea.vmem %s371, %s374
        %v376 = vld [vmem:[%s375] sm:$0xff]
        %v377 = vld [vmem:[%s375 + $0x8] sm:$0xff]
        %v378 = vld [vmem:[%s375 + $0x10] sm:$0xff]
        %v379 = vld [vmem:[%s375 + $0x18] sm:$0xff]
        %v380 = vld [vmem:[%s375 + $0x20] sm:$0xff]
        %v381 = vld [vmem:[%s375 + $0x28] sm:$0xff]
        %vm382 = vcmask 64512
        %v383 = vsel %vm382, %v376, 0.0
        %384 = vadd.xlane.f32.xlu0 %v383
        %v385 = vpop.xlane.xlu0 %384
        %v386 = vsel %vm382, %v377, 0.0
        %387 = vadd.xlane.f32.xlu0 %v386
        %v388 = vpop.xlane.xlu0 %387
        %v389 = vsel %vm382, %v378, 0.0
        %390 = vadd.xlane.f32.xlu0 %v389
        %v391 = vpop.xlane.xlu0 %390
        %v392 = vsel %vm382, %v379, 0.0
        %393 = vadd.xlane.f32.xlu0 %v392
        %v394 = vpop.xlane.xlu0 %393
        %v395 = vsel %vm382, %v380, 0.0
        %396 = vadd.xlane.f32.xlu0 %v395
        %v397 = vpop.xlane.xlu0 %396
        %v398 = vsel %vm382, %v381, 0.0
        %399 = vadd.xlane.f32.xlu0 %v398
        %v400 = vpop.xlane.xlu0 %399
        %v401 = vrcp.pop 8.0
        %v402 = vmul.f32 %v385, %v401
        %v403 = vmul.f32 %v388, %v401
        %v404 = vmul.f32 %v391, %v401
        %v405 = vmul.f32 %v394, %v401
        %v406 = vmul.f32 %v397, %v401
        %v407 = vmul.f32 %v400, %v401
        %v408 = vsub.f32 %v376, %v402
        %v409 = vsub.f32 %v377, %v403
        %v410 = vsub.f32 %v378, %v404
        %v411 = vsub.f32 %v379, %v405
        %v412 = vsub.f32 %v380, %v406
        %v413 = vsub.f32 %v381, %v407
        %v414 = vmul.f32 %v408, %v408
        %v415 = vmul.f32 %v409, %v409
        %v416 = vmul.f32 %v410, %v410
        %v417 = vmul.f32 %v411, %v411
        %v418 = vmul.f32 %v412, %v412
        %v419 = vmul.f32 %v413, %v413
        %v420 = vsel %vm382, %v414, 0.0
        %421 = vadd.xlane.f32.xlu0 %v420
        %v422 = vpop.xlane.xlu0 %421
        %v423 = vsel %vm382, %v415, 0.0
        %424 = vadd.xlane.f32.xlu0 %v423
        %v425 = vpop.xlane.xlu0 %424
        %v426 = vsel %vm382, %v416, 0.0
        %427 = vadd.xlane.f32.xlu0 %v426
        %v428 = vpop.xlane.xlu0 %427
        %v429 = vsel %vm382, %v417, 0.0
        %430 = vadd.xlane.f32.xlu0 %v429
        %v431 = vpop.xlane.xlu0 %430
        %v432 = vsel %vm382, %v418, 0.0
        %433 = vadd.xlane.f32.xlu0 %v432
        %v434 = vpop.xlane.xlu0 %433
        %v435 = vsel %vm382, %v419, 0.0
        %436 = vadd.xlane.f32.xlu0 %v435
        %v437 = vpop.xlane.xlu0 %436
        %v438 = vmul.f32 %v422, %v401
        %v439 = vmul.f32 %v425, %v401
        %v440 = vmul.f32 %v428, %v401
        %v441 = vmul.f32 %v431, %v401
        %v442 = vmul.f32 %v434, %v401
        %v443 = vmul.f32 %v437, %v401
        %v444 = vadd.f32 %v438, 1e-05
        %v445 = vadd.f32 %v439, 1e-05
        %v446 = vadd.f32 %v440, 1e-05
        %v447 = vadd.f32 %v441, 1e-05
        %v448 = vadd.f32 %v442, 1e-05
        %v449 = vadd.f32 %v443, 1e-05
        %v450 = vrsqrt.pop %v444
        %v451 = vrsqrt.pop %v445
        %v452 = vrsqrt.pop %v446
        %v453 = vrsqrt.pop %v447
        %v454 = vrsqrt.pop %v448
        %v455 = vrsqrt.pop %v449
        %v456 = vmul.f32 %v408, %v450
        %v457 = vmul.f32 %v409, %v451
        %v458 = vmul.f32 %v410, %v452
        %v459 = vmul.f32 %v411, %v453
        %v460 = vmul.f32 %v412, %v454
        %v461 = vmul.f32 %v413, %v455
        %v462 = vld [vmem:[%s1] sm:$0x1]
        %v464 = vlaneseq
        %v465 = vshrl.u32 %v464, 7
        %v466 = vsub.s32 0, %v465
        %v467 = vrot.slane %v462, %v466
        %v469 = vmul.f32 %v456, %v467
        %v470 = vmul.f32 %v457, %v467
        %v471 = vmul.f32 %v458, %v467
        %v472 = vmul.f32 %v459, %v467
        %v473 = vmul.f32 %v460, %v467
        %v474 = vmul.f32 %v461, %v467
        %v475 = vld [vmem:[%s2] sm:$0x1]
        %v477 = vlaneseq
        %v478 = vshrl.u32 %v477, 7
        %v479 = vsub.s32 0, %v478
        %v480 = vrot.slane %v475, %v479
        %v482 = vadd.f32 %v469, %v480
        %v483 = vadd.f32 %v470, %v480
        %v484 = vadd.f32 %v471, %v480
        %v485 = vadd.f32 %v472, %v480
        %v486 = vadd.f32 %v473, %v480
        %v487 = vadd.f32 %v474, %v480
        %v488 = vpack.c.bf16 %v483, %v482
        %v489 = vpack.c.bf16 %v485, %v484
        %v490 = vpack.c.bf16 %v487, %v486
        %v491 = vld [vmem:[%s3] sm:$0xf]
        %v492 = vld [vmem:[%s4] sm:$0x1]
        %v494 = vlaneseq
        %v495 = vshrl.u32 %v494, 7
        %v496 = vsub.s32 0, %v495
        %v497 = vrot.slane %v492, %v496
        %v500 = vsel %vm382, %v488, 0
        %v503 = vsel %vm382, %v489, 0
        %v506 = vsel %vm382, %v490, 0
        %vm508 = vcmask 1043456
        %v510 = vsel %vm508, %v491, 0
        %512 = vmatprep.subr.bf16.mxu0 0
        %513 = vmatpush1.bf16.msra.mxu0 0
        %514 = vmatprep.subr.bf16.mxu0 0
        %515 = vmatpush1.bf16.msra.mxu0 0
        %516 = vmatprep.subr.bf16.mxu0 0
        %517 = vmatpush1.bf16.msra.mxu0 0
        %518 = vmatprep.subr.bf16.mxu0 0
        %519 = vmatpush1.bf16.msra.mxu0 0
        %520 = vmatprep.subr.bf16.mxu0 0
        %521 = vmatpush1.bf16.msra.mxu0 0
        %522 = vmatprep.subr.bf16.mxu0 0
        %523 = vmatpush1.bf16.msra.mxu0 0
        %524 = vmatprep.subr.bf16.mxu0 0
        %525 = vmatpush1.bf16.msra.mxu0 0
        %526 = vmatprep.subr.bf16.mxu0 0
        %527 = vmatpush1.bf16.msra.mxu0 %v510
        %528 = vmatprep.subr.bf16.mxu0 0
        %529 = vmatpush2.bf16.msra.mxu0 0
        %530 = vmatprep.subr.bf16.mxu0 0
        %531 = vmatpush2.bf16.msra.mxu0 0
        %532 = vmatprep.subr.bf16.mxu0 0
        %533 = vmatpush2.bf16.msra.mxu0 0
        %534 = vmatprep.subr.bf16.mxu0 0
        %535 = vmatpush2.bf16.msra.mxu0 0
        %536 = vmatprep.subr.bf16.mxu0 0
        %537 = vmatpush2.bf16.msra.mxu0 0
        %538 = vmatprep.subr.bf16.mxu0 0
        %539 = vmatpush2.bf16.msra.mxu0 0
        %540 = vmatprep.subr.bf16.mxu0 0
        %541 = vmatpush2.bf16.msra.mxu0 0
        %542 = vmatprep.subr.bf16.mxu0 0
        %543 = vmatpush2.bf16.msra.mxu0 0
        %544 = vmatprep.mubr.bf16.mxu0 0
        %545 = vmatmul.mubr.bf16.gmra.mxu0 %v500
        %v546 = vpop.f32.mrf.mxu0
        %v547 = vadd.f32 %v497, %v546
        %v548 = vpop.f32.mrf.mxu0
        %v549 = vpop.f32.mrf.mxu0
        %v550 = vadd.f32 %v497, %v549
        %v551 = vpop.f32.mrf.mxu0
        %552 = vmatprep.mubr.bf16.mxu0 0
        %553 = vmatmul.mubr.bf16.gmra.mxu0 %v503
        %v554 = vpop.f32.mrf.mxu0
        %v555 = vadd.f32 %v497, %v554
        %v556 = vpop.f32.mrf.mxu0
        %v557 = vpop.f32.mrf.mxu0
        %v558 = vadd.f32 %v497, %v557
        %v559 = vpop.f32.mrf.mxu0
        %560 = vmatprep.mubr.bf16.mxu0 0
        %561 = vmatmul.mubr.bf16.gmra.mxu0 %v506
        %v562 = vpop.f32.mrf.mxu0
        %v563 = vadd.f32 %v497, %v562
        %v564 = vpop.f32.mrf.mxu0
        %v565 = vpop.f32.mrf.mxu0
        %v566 = vadd.f32 %v497, %v565
        %v567 = vpop.f32.mrf.mxu0
        %568 = vdwg.mxu0
        %v569 = vxor.u32 %v547, 2147483648
        %v570 = vxor.u32 %v550, 2147483648
        %v571 = vxor.u32 %v555, 2147483648
        %v572 = vxor.u32 %v558, 2147483648
        %v573 = vxor.u32 %v563, 2147483648
        %v574 = vxor.u32 %v566, 2147483648
        %v575 = vmul.f32 %v569, 1.442695
        %v576 = vpow.pop %v575
        %v577 = vmul.f32 %v570, 1.442695
        %v578 = vpow.pop %v577
        %v579 = vmul.f32 %v571, 1.442695
        %v580 = vpow.pop %v579
        %v581 = vmul.f32 %v572, 1.442695
        %v582 = vpow.pop %v581
        %v583 = vmul.f32 %v573, 1.442695
        %v584 = vpow.pop %v583
        %v585 = vmul.f32 %v574, 1.442695
        %v586 = vpow.pop %v585
        %v587 = vadd.f32 %v576, 1.0
        %v588 = vadd.f32 %v578, 1.0
        %v589 = vadd.f32 %v580, 1.0
        %v590 = vadd.f32 %v582, 1.0
        %v591 = vadd.f32 %v584, 1.0
        %v592 = vadd.f32 %v586, 1.0
        %v593 = vrcp.pop %v587
        %v594 = vmul.f32 1.0, %v593
        %v595 = vrcp.pop %v588
        %v596 = vmul.f32 1.0, %v595
        %v597 = vrcp.pop %v589
        %v598 = vmul.f32 1.0, %v597
        %v599 = vrcp.pop %v590
        %v600 = vmul.f32 1.0, %v599
        %v601 = vrcp.pop %v591
        %v602 = vmul.f32 1.0, %v601
        %v603 = vrcp.pop %v592
        %v604 = vmul.f32 1.0, %v603
        %v605 = vmul.f32 %v547, %v594
        %v606 = vmul.f32 %v550, %v596
        %v607 = vmul.f32 %v555, %v598
        %v608 = vmul.f32 %v558, %v600
        %v609 = vmul.f32 %v563, %v602
        %v610 = vmul.f32 %v566, %v604
        %617 = vrot.lane.b32.xlu0 %v605, 112
        %v618 = vpop.permute.xlu0 %617
        %619 = vrot.lane.b32.xlu0 %v606, 112
        %v620 = vpop.permute.xlu0 %619
        %621 = vrot.lane.b32.xlu0 %v607, 112
        %v622 = vpop.permute.xlu0 %621
        %623 = vrot.lane.b32.xlu0 %v608, 112
        %v624 = vpop.permute.xlu0 %623
        %625 = vrot.lane.b32.xlu0 %v609, 112
        %v626 = vpop.permute.xlu0 %625
        %627 = vrot.lane.b32.xlu0 %v610, 112
        %v628 = vpop.permute.xlu0 %627
        %v635 = vmul.f32 %v547, %v618
        %v636 = vmul.f32 %v550, %v620
        %v637 = vmul.f32 %v555, %v622
        %v638 = vmul.f32 %v558, %v624
        %v639 = vmul.f32 %v563, %v626
        %v640 = vmul.f32 %v566, %v628
        %v641 = vlaneseq
        %v642 = vshrl.u32 %v641, 7
        %v643 = vadd.s32 %v642, 8
        %v644 = vadd.s32 %v642, 16
        %v645 = vadd.s32 %v642, 24
        %v646 = vadd.s32 %v642, 32
        %v647 = vadd.s32 %v642, 40
        %v648 = vstv %s374
        %v649 = vadd.s32 %v648, %v642
        %v650 = vadd.s32 %v648, %v643
        %v651 = vadd.s32 %v648, %v644
        %v652 = vadd.s32 %v648, %v645
        %v653 = vadd.s32 %v648, %v646
        %v654 = vadd.s32 %v648, %v647
        %v655 = vsub.s32 %v649, 15
        %v656 = vsub.s32 %v650, 15
        %v657 = vsub.s32 %v651, 15
        %v658 = vsub.s32 %v652, 15
        %v659 = vsub.s32 %v653, 15
        %v660 = vsub.s32 %v654, 15
        %vm661 = vcmp.ge.s32.totalorder %v655, 0
        %vm662 = vcmp.ge.s32.totalorder %v656, 0
        %vm663 = vcmp.ge.s32.totalorder %v657, 0
        %vm664 = vcmp.ge.s32.totalorder %v658, 0
        %vm665 = vcmp.ge.s32.totalorder %v659, 0
        %vm666 = vcmp.ge.s32.totalorder %v660, 0
        %vm667 = vcmp.lt.s32.totalorder %v655, 16
        %vm668 = vcmp.lt.s32.totalorder %v656, 16
        %vm669 = vcmp.lt.s32.totalorder %v657, 16
        %vm670 = vcmp.lt.s32.totalorder %v658, 16
        %vm671 = vcmp.lt.s32.totalorder %v659, 16
        %vm672 = vcmp.lt.s32.totalorder %v660, 16
        %vm673 = vmand %vm661, %vm667
        %vm674 = vmand %vm662, %vm668
        %vm675 = vmand %vm663, %vm669
        %vm676 = vmand %vm664, %vm670
        %vm677 = vmand %vm665, %vm671
        %vm678 = vmand %vm666, %vm672
        %v679 = vsel %vm673, 1, 0
        %v680 = vsel %vm674, 1, 0
        %v681 = vsel %vm675, 1, 0
        %v682 = vsel %vm676, 1, 0
        %v683 = vsel %vm677, 1, 0
        %v684 = vsel %vm678, 1, 0
        %vm685 = vcmp.eq.s32.totalorder %v679, 1
        %vm686 = vcmp.eq.s32.totalorder %v680, 1
        %vm687 = vcmp.eq.s32.totalorder %v681, 1
        %vm688 = vcmp.eq.s32.totalorder %v682, 1
        %vm689 = vcmp.eq.s32.totalorder %v683, 1
        %vm690 = vcmp.eq.s32.totalorder %v684, 1
        %v691 = vsel %vm685, %v635, 0.0
        %v692 = vsel %vm686, %v636, 0.0
        %v693 = vsel %vm687, %v637, 0.0
        %v694 = vsel %vm688, %v638, 0.0
        %v695 = vsel %vm689, %v639, 0.0
        %v696 = vsel %vm690, %v640, 0.0
        %vm697 = vcmask 130048
        %698 = vst.msk [vmem:[#allocation2] sm:$0xff] %vm697, %v691
        %699 = vst.msk [vmem:[#allocation2 + $0x8] sm:$0xff] %vm697, %v692
        %700 = vst.msk [vmem:[#allocation2 + $0x10] sm:$0xff] %vm697, %v693
        %701 = vst.msk [vmem:[#allocation2 + $0x18] sm:$0xff] %vm697, %v694
        %702 = vst.msk [vmem:[#allocation2 + $0x20] sm:$0xff] %vm697, %v695
        %703 = vst.msk [vmem:[#allocation2 + $0x28] sm:$0xff] %vm697, %v696
        %v704 = vld [vmem:[#allocation2] sm:$0xff]
        %v705 = vld [vmem:[#allocation2 + $0x8] sm:$0xff]
        %v706 = vld [vmem:[%s5] sm:$0x1]
        %v707 = vlaneseq
        %v708 = vshrl.u32 %v707, 7
        %v709 = vsub.s32 0, %v708
        %v710 = vrot.slane %v706, %v709
        %v711 = vmul.f32 %v704, %v710
        %v712 = vmul.f32 %v705, %v710
        %v713 = vld [vmem:[%s6] sm:$0x1]
        %v715 = vlaneseq
        %v716 = vshrl.u32 %v715, 7
        %v717 = vsub.s32 0, %v716
        %v718 = vrot.slane %v713, %v717
        %v720 = vadd.f32 %v711, %v718
        %v721 = vadd.f32 %v712, %v718
        %v722 = vld [vmem:[#allocation2 + $0x1] sm:$0xff]
        %v723 = vld [vmem:[#allocation2 + $0x9] sm:$0xff]
        %v724 = vld [vmem:[%s5 + $0x1] sm:$0x1]
        %v725 = vlaneseq
        %v726 = vshrl.u32 %v725, 7
        %v727 = vsub.s32 0, %v726
        %v728 = vrot.slane %v724, %v727
        %v729 = vmul.f32 %v722, %v728
        %v730 = vmul.f32 %v723, %v728
        %v731 = vadd.f32 %v720, %v729
        %v732 = vadd.f32 %v721, %v730
        %v733 = vld [vmem:[#allocation2 + $0x2] sm:$0xff]
        %v734 = vld [vmem:[#allocation2 + $0xa] sm:$0xff]
        %v735 = vld [vmem:[%s5 + $0x2] sm:$0x1]
        %v736 = vlaneseq
        %v737 = vshrl.u32 %v736, 7
        %v738 = vsub.s32 0, %v737
        %v739 = vrot.slane %v735, %v738
        %v740 = vmul.f32 %v733, %v739
        %v741 = vmul.f32 %v734, %v739
        %v742 = vadd.f32 %v731, %v740
        %v743 = vadd.f32 %v732, %v741
        %v744 = vld [vmem:[#allocation2 + $0x3] sm:$0xff]
        %v745 = vld [vmem:[#allocation2 + $0xb] sm:$0xff]
        %v746 = vld [vmem:[%s5 + $0x3] sm:$0x1]
        %v747 = vlaneseq
        %v748 = vshrl.u32 %v747, 7
        %v749 = vsub.s32 0, %v748
        %v750 = vrot.slane %v746, %v749
        %v751 = vmul.f32 %v744, %v750
        %v752 = vmul.f32 %v745, %v750
        %v753 = vadd.f32 %v742, %v751
        %v754 = vadd.f32 %v743, %v752
        %v755 = vld [vmem:[#allocation2 + $0x4] sm:$0xff]
        %v756 = vld [vmem:[#allocation2 + $0xc] sm:$0xff]
        %v757 = vld [vmem:[%s5 + $0x4] sm:$0x1]
        %v758 = vlaneseq
        %v759 = vshrl.u32 %v758, 7
        %v760 = vsub.s32 0, %v759
        %v761 = vrot.slane %v757, %v760
        %v762 = vmul.f32 %v755, %v761
        %v763 = vmul.f32 %v756, %v761
        %v764 = vadd.f32 %v753, %v762
        %v765 = vadd.f32 %v754, %v763
        %v766 = vld [vmem:[#allocation2 + $0x5] sm:$0xff]
        %v767 = vld [vmem:[#allocation2 + $0xd] sm:$0xff]
        %v768 = vld [vmem:[%s5 + $0x5] sm:$0x1]
        %v769 = vlaneseq
        %v770 = vshrl.u32 %v769, 7
        %v771 = vsub.s32 0, %v770
        %v772 = vrot.slane %v768, %v771
        %v773 = vmul.f32 %v766, %v772
        %v774 = vmul.f32 %v767, %v772
        %v775 = vadd.f32 %v764, %v773
        %v776 = vadd.f32 %v765, %v774
        %v777 = vld [vmem:[#allocation2 + $0x6] sm:$0xff]
        %v778 = vld [vmem:[#allocation2 + $0xe] sm:$0xff]
        %v779 = vld [vmem:[%s5 + $0x6] sm:$0x1]
        %v780 = vlaneseq
        %v781 = vshrl.u32 %v780, 7
        %v782 = vsub.s32 0, %v781
        %v783 = vrot.slane %v779, %v782
        %v784 = vmul.f32 %v777, %v783
        %v785 = vmul.f32 %v778, %v783
        %v786 = vadd.f32 %v775, %v784
        %v787 = vadd.f32 %v776, %v785
        %v788 = vld [vmem:[#allocation2 + $0x7] sm:$0xff]
        %v789 = vld [vmem:[#allocation2 + $0xf] sm:$0xff]
        %v790 = vld [vmem:[%s5 + $0x7] sm:$0x1]
        %v791 = vlaneseq
        %v792 = vshrl.u32 %v791, 7
        %v793 = vsub.s32 0, %v792
        %v794 = vrot.slane %v790, %v793
        %v795 = vmul.f32 %v788, %v794
        %v796 = vmul.f32 %v789, %v794
        %v797 = vadd.f32 %v786, %v795
        %v798 = vadd.f32 %v787, %v796
        %v799 = vld [vmem:[#allocation2 + $0x10] sm:$0xff]
        %v800 = vld [vmem:[%s5 + $0x8] sm:$0x1]
        %v801 = vlaneseq
        %v802 = vshrl.u32 %v801, 7
        %v803 = vsub.s32 0, %v802
        %v804 = vrot.slane %v800, %v803
        %v805 = vmul.f32 %v705, %v804
        %v806 = vmul.f32 %v799, %v804
        %v807 = vadd.f32 %v797, %v805
        %v808 = vadd.f32 %v798, %v806
        %v809 = vld [vmem:[#allocation2 + $0x11] sm:$0xff]
        %v810 = vld [vmem:[%s5 + $0x9] sm:$0x1]
        %v811 = vlaneseq
        %v812 = vshrl.u32 %v811, 7
        %v813 = vsub.s32 0, %v812
        %v814 = vrot.slane %v810, %v813
        %v815 = vmul.f32 %v723, %v814
        %v816 = vmul.f32 %v809, %v814
        %v817 = vadd.f32 %v807, %v815
        %v818 = vadd.f32 %v808, %v816
        %v819 = vld [vmem:[#allocation2 + $0x12] sm:$0xff]
        %v820 = vld [vmem:[%s5 + $0xa] sm:$0x1]
        %v821 = vlaneseq
        %v822 = vshrl.u32 %v821, 7
        %v823 = vsub.s32 0, %v822
        %v824 = vrot.slane %v820, %v823
        %v825 = vmul.f32 %v734, %v824
        %v826 = vmul.f32 %v819, %v824
        %v827 = vadd.f32 %v817, %v825
        %v828 = vadd.f32 %v818, %v826
        %v829 = vld [vmem:[#allocation2 + $0x13] sm:$0xff]
        %v830 = vld [vmem:[%s5 + $0xb] sm:$0x1]
        %v831 = vlaneseq
        %v832 = vshrl.u32 %v831, 7
        %v833 = vsub.s32 0, %v832
        %v834 = vrot.slane %v830, %v833
        %v835 = vmul.f32 %v745, %v834
        %v836 = vmul.f32 %v829, %v834
        %v837 = vadd.f32 %v827, %v835
        %v838 = vadd.f32 %v828, %v836
        %v839 = vld [vmem:[#allocation2 + $0x14] sm:$0xff]
        %v840 = vld [vmem:[%s5 + $0xc] sm:$0x1]
        %v841 = vlaneseq
        %v842 = vshrl.u32 %v841, 7
        %v843 = vsub.s32 0, %v842
        %v844 = vrot.slane %v840, %v843
        %v845 = vmul.f32 %v756, %v844
        %v846 = vmul.f32 %v839, %v844
        %v847 = vadd.f32 %v837, %v845
        %v848 = vadd.f32 %v838, %v846
        %v849 = vld [vmem:[#allocation2 + $0x15] sm:$0xff]
        %v850 = vld [vmem:[%s5 + $0xd] sm:$0x1]
        %v851 = vlaneseq
        %v852 = vshrl.u32 %v851, 7
        %v853 = vsub.s32 0, %v852
        %v854 = vrot.slane %v850, %v853
        %v855 = vmul.f32 %v767, %v854
        %v856 = vmul.f32 %v849, %v854
        %v857 = vadd.f32 %v847, %v855
        %v858 = vadd.f32 %v848, %v856
        %v859 = vld [vmem:[#allocation2 + $0x16] sm:$0xff]
        %v860 = vld [vmem:[%s5 + $0xe] sm:$0x1]
        %v861 = vlaneseq
        %v862 = vshrl.u32 %v861, 7
        %v863 = vsub.s32 0, %v862
        %v864 = vrot.slane %v860, %v863
        %v865 = vmul.f32 %v778, %v864
        %v866 = vmul.f32 %v859, %v864
        %v867 = vadd.f32 %v857, %v865
        %v868 = vadd.f32 %v858, %v866
        %v869 = vld [vmem:[#allocation2 + $0x17] sm:$0xff]
        %v870 = vld [vmem:[%s5 + $0xf] sm:$0x1]
        %v871 = vlaneseq
        %v872 = vshrl.u32 %v871, 7
        %v873 = vsub.s32 0, %v872
        %v874 = vrot.slane %v870, %v873
        %v875 = vmul.f32 %v789, %v874
        %v876 = vmul.f32 %v869, %v874
        %v877 = vadd.f32 %v867, %v875
        %v878 = vadd.f32 %v868, %v876
        %v879 = vld [vmem:[#allocation2 + $0x18] sm:$0xff]
        %v880 = vld [vmem:[%s5 + $0x10] sm:$0x1]
        %v881 = vlaneseq
        %v882 = vshrl.u32 %v881, 7
        %v883 = vsub.s32 0, %v882
        %v884 = vrot.slane %v880, %v883
        %v885 = vmul.f32 %v799, %v884
        %v886 = vmul.f32 %v879, %v884
        %v887 = vadd.f32 %v877, %v885
        %v888 = vadd.f32 %v878, %v886
        %v889 = vld [vmem:[#allocation2 + $0x19] sm:$0xff]
        %v890 = vld [vmem:[%s5 + $0x11] sm:$0x1]
        %v891 = vlaneseq
        %v892 = vshrl.u32 %v891, 7
        %v893 = vsub.s32 0, %v892
        %v894 = vrot.slane %v890, %v893
        %v895 = vmul.f32 %v809, %v894
        %v896 = vmul.f32 %v889, %v894
        %v897 = vadd.f32 %v887, %v895
        %v898 = vadd.f32 %v888, %v896
        %v899 = vld [vmem:[#allocation2 + $0x1a] sm:$0xff]
        %v900 = vld [vmem:[%s5 + $0x12] sm:$0x1]
        %v901 = vlaneseq
        %v902 = vshrl.u32 %v901, 7
        %v903 = vsub.s32 0, %v902
        %v904 = vrot.slane %v900, %v903
        %v905 = vmul.f32 %v819, %v904
        %v906 = vmul.f32 %v899, %v904
        %v907 = vadd.f32 %v897, %v905
        %v908 = vadd.f32 %v898, %v906
        %v909 = vld [vmem:[#allocation2 + $0x1b] sm:$0xff]
        %v910 = vld [vmem:[%s5 + $0x13] sm:$0x1]
        %v911 = vlaneseq
        %v912 = vshrl.u32 %v911, 7
        %v913 = vsub.s32 0, %v912
        %v914 = vrot.slane %v910, %v913
        %v915 = vmul.f32 %v829, %v914
        %v916 = vmul.f32 %v909, %v914
        %v917 = vadd.f32 %v907, %v915
        %v918 = vadd.f32 %v908, %v916
        %v919 = vld [vmem:[#allocation2 + $0x1c] sm:$0xff]
        %v920 = vld [vmem:[%s5 + $0x14] sm:$0x1]
        %v921 = vlaneseq
        %v922 = vshrl.u32 %v921, 7
        %v923 = vsub.s32 0, %v922
        %v924 = vrot.slane %v920, %v923
        %v925 = vmul.f32 %v839, %v924
        %v926 = vmul.f32 %v919, %v924
        %v927 = vadd.f32 %v917, %v925
        %v928 = vadd.f32 %v918, %v926
        %v929 = vld [vmem:[#allocation2 + $0x1d] sm:$0xff]
        %v930 = vld [vmem:[%s5 + $0x15] sm:$0x1]
        %v931 = vlaneseq
        %v932 = vshrl.u32 %v931, 7
        %v933 = vsub.s32 0, %v932
        %v934 = vrot.slane %v930, %v933
        %v935 = vmul.f32 %v849, %v934
        %v936 = vmul.f32 %v929, %v934
        %v937 = vadd.f32 %v927, %v935
        %v938 = vadd.f32 %v928, %v936
        %v939 = vld [vmem:[#allocation2 + $0x1e] sm:$0xff]
        %v940 = vld [vmem:[%s5 + $0x16] sm:$0x1]
        %v941 = vlaneseq
        %v942 = vshrl.u32 %v941, 7
        %v943 = vsub.s32 0, %v942
        %v944 = vrot.slane %v940, %v943
        %v945 = vmul.f32 %v859, %v944
        %v946 = vmul.f32 %v939, %v944
        %v947 = vadd.f32 %v937, %v945
        %v948 = vadd.f32 %v938, %v946
        %v949 = vld [vmem:[#allocation2 + $0x1f] sm:$0xff]
        %v950 = vld [vmem:[%s5 + $0x17] sm:$0x1]
        %v951 = vlaneseq
        %v952 = vshrl.u32 %v951, 7
        %v953 = vsub.s32 0, %v952
        %v954 = vrot.slane %v950, %v953
        %v955 = vmul.f32 %v869, %v954
        %v956 = vmul.f32 %v949, %v954
        %v957 = vadd.f32 %v947, %v955
        %v958 = vadd.f32 %v948, %v956
        %v959 = vld [vmem:[#allocation2 + $0x20] sm:$0xff]
        %v960 = vld [vmem:[%s5 + $0x18] sm:$0x1]
        %v961 = vlaneseq
        %v962 = vshrl.u32 %v961, 7
        %v963 = vsub.s32 0, %v962
        %v964 = vrot.slane %v960, %v963
        %v965 = vmul.f32 %v879, %v964
        %v966 = vmul.f32 %v959, %v964
        %v967 = vadd.f32 %v957, %v965
        %v968 = vadd.f32 %v958, %v966
        %v969 = vld [vmem:[#allocation2 + $0x21] sm:$0xff]
        %v970 = vld [vmem:[%s5 + $0x19] sm:$0x1]
        %v971 = vlaneseq
        %v972 = vshrl.u32 %v971, 7
        %v973 = vsub.s32 0, %v972
        %v974 = vrot.slane %v970, %v973
        %v975 = vmul.f32 %v889, %v974
        %v976 = vmul.f32 %v969, %v974
        %v977 = vadd.f32 %v967, %v975
        %v978 = vadd.f32 %v968, %v976
        %v979 = vld [vmem:[#allocation2 + $0x22] sm:$0xff]
        %v980 = vld [vmem:[%s5 + $0x1a] sm:$0x1]
        %v981 = vlaneseq
        %v982 = vshrl.u32 %v981, 7
        %v983 = vsub.s32 0, %v982
        %v984 = vrot.slane %v980, %v983
        %v985 = vmul.f32 %v899, %v984
        %v986 = vmul.f32 %v979, %v984
        %v987 = vadd.f32 %v977, %v985
        %v988 = vadd.f32 %v978, %v986
        %v989 = vld [vmem:[#allocation2 + $0x23] sm:$0xff]
        %v990 = vld [vmem:[%s5 + $0x1b] sm:$0x1]
        %v991 = vlaneseq
        %v992 = vshrl.u32 %v991, 7
        %v993 = vsub.s32 0, %v992
        %v994 = vrot.slane %v990, %v993
        %v995 = vmul.f32 %v909, %v994
        %v996 = vmul.f32 %v989, %v994
        %v997 = vadd.f32 %v987, %v995
        %v998 = vadd.f32 %v988, %v996
        %v999 = vld [vmem:[#allocation2 + $0x24] sm:$0xff]
        %v1000 = vld [vmem:[%s5 + $0x1c] sm:$0x1]
        %v1001 = vlaneseq
        %v1002 = vshrl.u32 %v1001, 7
        %v1003 = vsub.s32 0, %v1002
        %v1004 = vrot.slane %v1000, %v1003
        %v1005 = vmul.f32 %v919, %v1004
        %v1006 = vmul.f32 %v999, %v1004
        %v1007 = vadd.f32 %v997, %v1005
        %v1008 = vadd.f32 %v998, %v1006
        %v1009 = vld [vmem:[#allocation2 + $0x25] sm:$0xff]
        %v1010 = vld [vmem:[%s5 + $0x1d] sm:$0x1]
        %v1011 = vlaneseq
        %v1012 = vshrl.u32 %v1011, 7
        %v1013 = vsub.s32 0, %v1012
        %v1014 = vrot.slane %v1010, %v1013
        %v1015 = vmul.f32 %v929, %v1014
        %v1016 = vmul.f32 %v1009, %v1014
        %v1017 = vadd.f32 %v1007, %v1015
        %v1018 = vadd.f32 %v1008, %v1016
        %v1019 = vld [vmem:[#allocation2 + $0x26] sm:$0xff]
        %v1020 = vld [vmem:[%s5 + $0x1e] sm:$0x1]
        %v1021 = vlaneseq
        %v1022 = vshrl.u32 %v1021, 7
        %v1023 = vsub.s32 0, %v1022
        %v1024 = vrot.slane %v1020, %v1023
        %v1025 = vmul.f32 %v939, %v1024
        %v1026 = vmul.f32 %v1019, %v1024
        %v1027 = vadd.f32 %v1017, %v1025
        %v1028 = vadd.f32 %v1018, %v1026
        %vm1029 = vcmp.gt.f32.partialorder %v1027, 0.0
        %vm1030 = vcmp.gt.f32.partialorder %v1028, 0.0
        %v1031 = vld [vmem:[%s7] sm:$0x1]
        %v1033 = vlaneseq
        %v1034 = vshrl.u32 %v1033, 7
        %v1035 = vsub.s32 0, %v1034
        %v1036 = vrot.slane %v1031, %v1035
        %v1038 = vmul.f32 %v1036, %v1027
        %v1039 = vmul.f32 %v1036, %v1028
        %v1040 = vsel %vm1029, %v1027, %v1038
        %v1041 = vsel %vm1030, %v1028, %v1039
        %v1042 = vpack.c.bf16 %v1041, %v1040
        %v1043 = vld [vmem:[%s8] sm:$0xf]
        %v1044 = vld [vmem:[%s8 + $0x4] sm:$0xf]
        %v1045 = vld [vmem:[%s9] sm:$0x1]
        %v1047 = vlaneseq
        %v1048 = vshrl.u32 %v1047, 7
        %v1049 = vsub.s32 0, %v1048
        %v1050 = vrot.slane %v1045, %v1049
        %v1054 = vunpack.c.l.b16 %v1043
        %v1055 = vunpack.c.l.b16 %v1044
        %v1056 = vpack.c.b16 %v1055, %v1054
        %v1059 = vsel %vm697, %v1042, 0
        %1061 = vmatprep.subr.bf16.mxu0 0
        %1062 = vmatpush1.bf16.msra.mxu0 0
        %1063 = vmatprep.subr.bf16.mxu0 0
        %1064 = vmatpush1.bf16.msra.mxu0 0
        %1065 = vmatprep.subr.bf16.mxu0 0
        %1066 = vmatpush1.bf16.msra.mxu0 0
        %1067 = vmatprep.subr.bf16.mxu0 0
        %1068 = vmatpush1.bf16.msra.mxu0 0
        %1069 = vmatprep.subr.bf16.mxu0 0
        %1070 = vmatpush1.bf16.msra.mxu0 0
        %1071 = vmatprep.subr.bf16.mxu0 0
        %1072 = vmatpush1.bf16.msra.mxu0 0
        %1073 = vmatprep.subr.bf16.mxu0 0
        %1074 = vmatpush1.bf16.msra.mxu0 0
        %1075 = vmatprep.subr.bf16.mxu0 0
        %1076 = vmatpush1.bf16.msra.mxu0 %v1056
        %1077 = vmatprep.subr.bf16.mxu0 0
        %1078 = vmatpush2.bf16.msra.mxu0 0
        %1079 = vmatprep.subr.bf16.mxu0 0
        %1080 = vmatpush2.bf16.msra.mxu0 0
        %1081 = vmatprep.subr.bf16.mxu0 0
        %1082 = vmatpush2.bf16.msra.mxu0 0
        %1083 = vmatprep.subr.bf16.mxu0 0
        %1084 = vmatpush2.bf16.msra.mxu0 0
        %1085 = vmatprep.subr.bf16.mxu0 0
        %1086 = vmatpush2.bf16.msra.mxu0 0
        %1087 = vmatprep.subr.bf16.mxu0 0
        %1088 = vmatpush2.bf16.msra.mxu0 0
        %1089 = vmatprep.subr.bf16.mxu0 0
        %1090 = vmatpush2.bf16.msra.mxu0 0
        %1091 = vmatprep.subr.bf16.mxu0 0
        %1092 = vmatpush2.bf16.msra.mxu0 0
        %1093 = vmatprep.mubr.bf16.mxu0 0
        %1094 = vmatmul.mubr.bf16.gmra.mxu0 %v1059
        %v1095 = vpop.f32.mrf.mxu0
        %v1096 = vadd.f32 %v1050, %v1095
        %v1097 = vpop.f32.mrf.mxu0
        %v1098 = vpop.f32.mrf.mxu0
        %v1099 = vadd.f32 %v1050, %v1098
        %v1100 = vpop.f32.mrf.mxu0
        %1101 = vdwg.mxu0
        %1102 = vst [vmem:[%s366] sm:$0xff] %v1096
        %1103 = vst [vmem:[%s366 + $0x8] sm:$0xff] %v1099
        %s1104 = sand.u32 %s261, 1
        %s1105 = scalar_lea.sflag [#allocation4], %s1104
        %s1106 = sand.u32 %s261, 1
        %s1107 = smul.addr %s1106, 16
        %s1108 = scalar_lea.vmem [#allocation3], %s1107
        // Predicated region
        $region61: #{tpu_custom_call.1} parent=59 // pred_check
          %p1109 = pneg %p271
        $region62: #{tpu_custom_call.1} parent=59 // pred_check_branch
          %1111 = sbr.rel (%p1109) target = $region64
        $region63: #{tpu_custom_call.1} parent=59 // pred_region
          %s1112 = smul.u32 2, %s29
          %s1114 = ssub.s32 256, 256
          %1115 = vsyncadd %s1105, %s1114
          %s1116 = smul.addr %s28, 2
          %s1117 = sadd.s32 %s1112, %s1116
          %s1118 = smul.addr %s1117, 128
          %s1119 = scalar_lea.hbm %s10, %s1118
          %s1120 = sshll.u32 %s1108, 4
          %s1121 = int_to_ptr.vmem [resolvable:$true] %s1120
          %1126 = dma.vmem_to_hbm [thread:$0]  %s1121, 256, %s1119, %s1105, 128, 128, 8
        $region64: #{tpu_custom_call.1} parent=59 // pred_fallthru
          _
      $region60: #{tpu_custom_call.1} parent=5 // pred_fallthru
        _
      %p1127 = scmp.le.s32.totalorder 2, %s19
      // Predicated region
      $region65: #{tpu_custom_call.1} parent=5 // pred_check
        %p1128 = pneg %p1127
      $region66: #{tpu_custom_call.1} parent=5 // pred_check_branch
        %1130 = sbr.rel (%p1128) target = $region68
      $region67: #{tpu_custom_call.1} parent=5 // pred_region
        %s1131 = ssub.s32 %s19, 2
        // Predicated region
        $region69: #{tpu_custom_call.1} parent=67 // pred_check
          %p1132 = pneg %p277
        $region70: #{tpu_custom_call.1} parent=67 // pred_check_branch
          %1134 = sbr.rel (%p1132) target = $region72
        $region71: #{tpu_custom_call.1} parent=67 // pred_region
          %s1135 = sand.u32 %s262, 1
          %s1136 = scalar_lea.sflag [#allocation4], %s1135
          %s1137 = sand.u32 %s262, 1
          %s1138 = smul.addr %s1137, 16
          %s1139 = scalar_lea.vmem [#allocation3], %s1138
          %1140 = dma.done %s1136, 256
        $region72: #{tpu_custom_call.1} parent=67 // pred_fallthru
          _
      $region68: #{tpu_custom_call.1} parent=5 // pred_fallthru
        _
    $region6: #{tpu_custom_call.1} parent=1 // loop_footer
      %s23 = sadd.s32 1, %s19
    $region7: #{tpu_custom_call.1} parent=1 // loop_footer_branch
      %18 = sbr.rel target = $region3
    $region8: #{tpu_custom_call.1} parent=1 // loop_exit
      _
    %1141 = vsyncpa [#allocation4], 1
    %s1142 = scalar_lea.sflag [#allocation4], 1
    %1143 = vsyncpa %s1142, 1

</llo_original>
